<compile_context>
chip_gen: v7x
topology: tpu7x:2x2x1
jax: 0.10.0
libtpu: 0.0.40
codegen_flags: <defaults>
</compile_context>

<pallas_src>
from functools import lru_cache, partial

import numpy as np
import jax
import jax.numpy as jnp
from jax.experimental import pallas as pl
from jax.experimental.pallas import tpu as pltpu


# Scaled-down camera crop windows (top, left, height, width) for the small synthetic test image.
# (The original module crops ~1800-2000 px windows from a full-resolution camera frame.)
CAMERA_CROPS = {
    "cam1": (0, 8, 32, 32),
    "cam2": (0, 6, 40, 40),
    "cam3": (4, 10, 32, 32),
    "cam4": (4, 12, 32, 32),
}


def _resize_matrix(in_size: int, out_size: int) -> np.ndarray:
    """PIL-BILINEAR-style (antialiased triangle filter) 1-D resize as a dense matrix.

    Returns W of shape (out_size, in_size) s.t. resized = W @ signal.
    """
    scale = in_size / out_size
    support = max(1.0, scale)  # widen the triangle filter when downscaling (antialias)
    centers = (np.arange(out_size) + 0.5) * scale
    src = np.arange(in_size) + 0.5
    x = (src[None, :] - centers[:, None]) / support
    w = np.clip(1.0 - np.abs(x), 0.0, None)
    w = w / np.maximum(w.sum(axis=1, keepdims=True), 1e-12)
    return w.astype(np.float32)


@lru_cache(maxsize=None)
def _fused_resize_operator(hc: int, wc: int, size: int, kpad: int) -> np.ndarray:
    """kron(Rh, Rw)^T zero-padded to kpad contraction rows: (kpad, size*size) float32."""
    rh = _resize_matrix(hc, size)                 # (size, hc)
    rw = _resize_matrix(wc, size)                 # (size, wc)
    k = np.kron(rh, rw).T.astype(np.float32)      # (hc*wc, size*size)
    out = np.zeros((kpad, size * size), np.float32)
    out[: hc * wc] = k
    return out


@partial(jax.jit, static_argnames=("size", "mean", "std", "cameras"))
def camera_specific_transform_batch(images_u8, *, size=16,
                                    mean=(0.5, 0.5, 0.5), std=(0.5, 0.5, 0.5),
                                    cameras=tuple(CAMERA_CROPS)):
    """images_u8: (B, H, W, 3) uint8 RGB. Returns (num_cameras, B, 3, size, size) float32."""
    B, H, W, C = images_u8.shape
    assert C == 3
    npix = size * size
    assert npix % 128 == 0, "fused-Kronecker variant needs size*size to be lane-dense"
    num_cams = len(cameras)

    same_size = (H, W) == (size, size)

    # Unified contraction length (zero-padded, lane-dense) so one compilation serves all cameras.
    if same_size:
        kmax = npix
    else:
        kmax = max(CAMERA_CROPS[c][2] * CAMERA_CROPS[c][3] for c in cameras)
    kpad = ((kmax + 127) // 128) * 128

    # M tiling: rows are (channel, frame) pairs, channel-major.  32-row granularity keeps the
    # uint8 input sublane tiles unmasked; 256 matches the v6e/v7x MXU height for large batches.
    m_rows = 3 * B
    tm = 256 if m_rows > 256 else ((m_rows + 31) // 32) * 32
    m_pad = pl.cdiv(m_rows, tm) * tm

    x_groups, k_groups = [], []
    for cam in cameras:
        if same_size:
            # Original module skips crop+resize when the image is already (size, size).
            crop, h, w = images_u8, size, size
            k_np = np.zeros((kpad, npix), np.float32)
            k_np[:npix] = np.eye(npix, dtype=np.float32)
        else:
            top, left, h, w = CAMERA_CROPS[cam]
            crop = images_u8[:, top:top + h, left:left + w, :]      # static slice, fuses into producer
            k_np = _fused_resize_operator(h, w, size, kpad)
        # Channel-major rows: row r -> channel r // B, frame r % B (lets the kernel pick the
        # per-row normalization with two comparisons instead of an integer modulo).
        xc = jnp.transpose(crop, (3, 0, 1, 2)).reshape(m_rows, h * w)       # (3B, h*w) uint8
        xc = jnp.pad(xc, ((0, m_pad - m_rows), (0, kpad - h * w)))
        x_groups.append(xc)
        k_groups.append(k_np)

    x = jnp.stack(x_groups)                       # (G, m_pad, kpad) uint8
    k = jnp.asarray(np.stack(k_groups))           # (G, kpad, npix) f32 -- jit-time baked constant

    # ToTensor + Normalize pre-folded:  (q/255 - mean)/std == q*scale + bias
    scale = tuple(1.0 / (255.0 * float(s)) for s in std)
    bias = tuple(-float(m) / float(s) for m, s in zip(mean, std))

    def kernel(x_ref, k_ref, o_ref):
        xb = x_ref[...].astype(jnp.float32)                                 # (tm, kpad), in-kernel u8->f32
        y = jnp.dot(xb, k_ref[...], preferred_element_type=jnp.float32)     # (tm, npix), single MXU op
        # PIL resize emits uint8: half-away-from-zero rounding (valid for y >= 0).
        y = jnp.clip(jnp.floor(y + 0.5), 0.0, 255.0)
        # Per-row channel from the channel-major packing: ch = (r >= B) + (r >= 2B).
        r = pl.program_id(1) * tm + jax.lax.broadcasted_iota(jnp.int32, (tm, 1), 0)
        ch1 = (r >= B).astype(jnp.float32)
        ch2 = (r >= 2 * B).astype(jnp.float32)
        sc = scale[0] + (scale[1] - scale[0]) * ch1 + (scale[2] - scale[1]) * ch2
        bs = bias[0] + (bias[1] - bias[0]) * ch1 + (bias[2] - bias[1]) * ch2
        o_ref[...] = y * sc + bs

    out = pl.pallas_call(
        kernel,
        out_shape=jax.ShapeDtypeStruct((num_cams, m_pad, npix), jnp.float32),
        grid=(num_cams, m_pad // tm),
        in_specs=[
            pl.BlockSpec((None, tm, kpad), lambda g, m: (g, m, 0)),      # uint8 pixel rows
            pl.BlockSpec((None, kpad, npix), lambda g, m: (g, 0, 0)),    # per-camera K, resident over m
        ],
        out_specs=pl.BlockSpec((None, tm, npix), lambda g, m: (g, m, 0)),  # lane-dense (npix % 128 == 0)
        compiler_params=pltpu.CompilerParams(
            dimension_semantics=("parallel", "parallel")),
    )(x, k)

    out = out[:, :m_rows, :].reshape(num_cams, 3, B, size, size)
    return jnp.transpose(out, (0, 2, 1, 3, 4))    # (num_cams, B, 3, size, size)


def camera_specific_transform(image_u8, camera, size=16,
                              mean=(0.5, 0.5, 0.5), std=(0.5, 0.5, 0.5)):
    """Single-crop convenience path matching the PyTorch forward: (H, W, 3) u8 -> (3, size, size) f32."""
    out = camera_specific_transform_batch(image_u8[None], size=size,
                                          mean=tuple(mean), std=tuple(std),
                                          cameras=(camera,))
    return out[0, 0]


if __name__ == "__main__":
    key = jax.random.PRNGKey(0)
    B, H, W = 8, 64, 64            # 8 frames x 4 cameras batched into ONE pallas_call
    size = 16
    images = jax.random.randint(key, (B, H, W, 3), 0, 256, dtype=jnp.int32).astype(jnp.uint8)
    cameras = tuple(CAMERA_CROPS)

    out = camera_specific_transform_batch(images, size=size, cameras=cameras)
    out = jax.block_until_ready(out)
    assert out.shape == (len(cameras), B, 3, size, size) and out.dtype == jnp.float32

    half_lsb = 0.5 * (2.0 / 255.0)
    images_np = np.asarray(images)
    for gi, cam in enumerate(cameras):
        top, left, h, w = CAMERA_CROPS[cam]
        # Pure host float64 reference of the same math (separable resize, no quantization).
        crop = images_np[:, top:top + h, left:left + w, :]
        xc = np.transpose(crop, (0, 3, 1, 2)).astype(np.float64)        # (B, 3, h, w)
        rh = _resize_matrix(h, size).astype(np.float64)
        rw = _resize_matrix(w, size).astype(np.float64)
        y_ref = np.einsum("oh,bchw,pw->bcop", rh, xc, rw)               # pre-quantization pixels
        ref_unrounded = y_ref * (2.0 / 255.0) - 1.0                     # normalized, unrounded

        out_np = np.asarray(out[gi])
        # (a) within half a uint8 LSB (normalized units) of the exact resized value.
        np.testing.assert_allclose(out_np, ref_unrounded, atol=half_lsb + 1.5e-3, rtol=0.0)
        # (b) exactly on the quantized uint8 grid after un-normalizing.
        u = (out_np * 0.5 + 0.5) * 255.0
        assert np.all(np.abs(u - np.round(u)) < 1e-3), "output not on the uint8 quantization grid"
        assert np.all(u > -1e-3) and np.all(u < 255.0 + 1e-3), "output outside uint8 range"

    # Single-crop convenience path (original forward signature) agrees with the batched result
    # (allow one uint8 LSB of slack for any boundary-pixel flip from different M padding).
    single = jax.block_until_ready(camera_specific_transform(images[0], "cam2", size=size))
    assert single.shape == (3, size, size) and single.dtype == jnp.float32
    np.testing.assert_allclose(np.asarray(single), np.asarray(out[1, 0]),
                               atol=(2.0 / 255.0) + 1e-6, rtol=0.0)

    print("KERNEL_OK")
</pallas_src>

<mosaic_0001>
module attributes {stable_mosaic.version = 11 : i64} {
  func.func @kernel(%arg0: i32, %arg1: i32, %arg2: memref<1x32x1664xi8, #tpu.memory_space<vmem>>, %arg3: memref<1x1664x256xf32, #tpu.memory_space<vmem>>, %arg4: memref<1x32x256xf32, #tpu.memory_space<vmem>>) attributes {dimension_semantics = [#tpu.dimension_semantics<parallel>, #tpu.dimension_semantics<parallel>], iteration_bounds = array<i64: 4, 1>, scalar_prefetch = 0 : i64, scratch_operands = 0 : i64, tpu.core_type = #tpu.core_type<tc>, window_params = [{transform_indices = @transform_0, window_bounds = array<i64: 1, 32, 1664>}, {transform_indices = @transform_1, window_bounds = array<i64: 1, 1664, 256>}, {transform_indices = @transform_2, window_bounds = array<i64: 1, 32, 256>}]} {
    %c0 = arith.constant 0 : index
    %c0_0 = arith.constant 0 : index
    %c0_1 = arith.constant 0 : index
    %0 = vector.load %arg2[%c0, %c0_0, %c0_1] : memref<1x32x1664xi8, #tpu.memory_space<vmem>>, vector<1x32x1664xi8>
    %1 = vector.shape_cast %0 : vector<1x32x1664xi8> to vector<32x1664xi8>
    %2 = arith.uitofp %1 : vector<32x1664xi8> to vector<32x1664xf32>
    %c0_2 = arith.constant 0 : index
    %c0_3 = arith.constant 0 : index
    %c0_4 = arith.constant 0 : index
    %3 = vector.load %arg3[%c0_2, %c0_3, %c0_4] : memref<1x1664x256xf32, #tpu.memory_space<vmem>>, vector<1x1664x256xf32>
    %4 = vector.shape_cast %3 : vector<1x1664x256xf32> to vector<1664x256xf32>
    %cst = arith.constant dense<0.000000e+00> : vector<32x256xf32>
    %5 = tpu.matmul %2, %4, %cst {dimension_numbers = #tpu.dot_dimension_numbers<[1], [0], [0], [1], [0, 0, 1, 1], [], []>} : vector<32x1664xf32>, vector<1664x256xf32>, vector<32x256xf32> -> vector<32x256xf32>
    %cst_5 = arith.constant 5.000000e-01 : f32
    %6 = vector.broadcast %cst_5 : f32 to vector<32x256xf32>
    %7 = arith.addf %5, %6 : vector<32x256xf32>
    %8 = math.floor %7 : vector<32x256xf32>
    %cst_6 = arith.constant 0.000000e+00 : f32
    %cst_7 = arith.constant 2.550000e+02 : f32
    %9 = vector.broadcast %cst_6 : f32 to vector<32x256xf32>
    %10 = arith.maximumf %9, %8 : vector<32x256xf32>
    %11 = vector.broadcast %cst_7 : f32 to vector<32x256xf32>
    %12 = arith.minimumf %11, %10 : vector<32x256xf32>
    %c32_i32 = arith.constant 32 : i32
    %13 = arith.muli %arg1, %c32_i32 : i32
    %14 = tpu.iota {dimensions = array<i32: 0>} : vector<32x1xi32>
    %15 = vector.broadcast %13 : i32 to vector<32x1xi32>
    %16 = arith.addi %15, %14 : vector<32x1xi32>
    %c8_i32 = arith.constant 8 : i32
    %17 = vector.broadcast %c8_i32 : i32 to vector<32x1xi32>
    %18 = arith.cmpi sge, %16, %17 : vector<32x1xi32>
    %19 = arith.extui %18 : vector<32x1xi1> to vector<32x1xi32>
    %20 = arith.sitofp %19 : vector<32x1xi32> to vector<32x1xf32>
    %c16_i32 = arith.constant 16 : i32
    %21 = vector.broadcast %c16_i32 : i32 to vector<32x1xi32>
    %22 = arith.cmpi sge, %16, %21 : vector<32x1xi32>
    %23 = arith.extui %22 : vector<32x1xi1> to vector<32x1xi32>
    %24 = arith.sitofp %23 : vector<32x1xi32> to vector<32x1xf32>
    %cst_8 = arith.constant 0.000000e+00 : f32
    %25 = vector.broadcast %cst_8 : f32 to vector<32x1xf32>
    %26 = arith.mulf %25, %20 : vector<32x1xf32>
    %cst_9 = arith.constant 0.00784313772 : f32
    %27 = vector.broadcast %cst_9 : f32 to vector<32x1xf32>
    %28 = arith.addf %27, %26 : vector<32x1xf32>
    %cst_10 = arith.constant 0.000000e+00 : f32
    %29 = vector.broadcast %cst_10 : f32 to vector<32x1xf32>
    %30 = arith.mulf %29, %24 : vector<32x1xf32>
    %31 = arith.addf %28, %30 : vector<32x1xf32>
    %cst_11 = arith.constant 0.000000e+00 : f32
    %32 = vector.broadcast %cst_11 : f32 to vector<32x1xf32>
    %33 = arith.mulf %32, %20 : vector<32x1xf32>
    %cst_12 = arith.constant -1.000000e+00 : f32
    %34 = vector.broadcast %cst_12 : f32 to vector<32x1xf32>
    %35 = arith.addf %34, %33 : vector<32x1xf32>
    %cst_13 = arith.constant 0.000000e+00 : f32
    %36 = vector.broadcast %cst_13 : f32 to vector<32x1xf32>
    %37 = arith.mulf %36, %24 : vector<32x1xf32>
    %38 = arith.addf %35, %37 : vector<32x1xf32>
    %39 = vector.broadcast %31 : vector<32x1xf32> to vector<32x256xf32>
    %40 = arith.mulf %12, %39 : vector<32x256xf32>
    %41 = vector.broadcast %38 : vector<32x1xf32> to vector<32x256xf32>
    %42 = arith.addf %40, %41 : vector<32x256xf32>
    %c0_14 = arith.constant 0 : index
    %c0_15 = arith.constant 0 : index
    %c0_16 = arith.constant 0 : index
    %43 = vector.load %arg4[%c0_14, %c0_15, %c0_16] : memref<1x32x256xf32, #tpu.memory_space<vmem>>, vector<1x32x256xf32>
    %44 = vector.shape_cast %43 : vector<1x32x256xf32> to vector<32x256xf32>
    %45 = vector.shape_cast %42 : vector<32x256xf32> to vector<1x32x256xf32>
    tpu.vector_store %arg4[%c0_14, %c0_15, %c0_16], %45 {strides = array<i32>} : memref<1x32x256xf32, #tpu.memory_space<vmem>>, vector<1x32x256xf32>,
    return
  }
  func.func @transform_0(%arg0: i32, %arg1: i32) -> (i32, i32, i32) {
    %c0_i32 = arith.constant 0 : i32
    %c0_i32_0 = arith.constant 0 : i32
    return %arg0, %arg1, %c0_i32 : i32, i32, i32
  }
  func.func @transform_1(%arg0: i32, %arg1: i32) -> (i32, i32, i32) {
    %c0_i32 = arith.constant 0 : i32
    %c0_i32_0 = arith.constant 0 : i32
    %c0_i32_1 = arith.constant 0 : i32
    return %arg0, %c0_i32, %c0_i32_0 : i32, i32, i32
  }
  func.func @transform_2(%arg0: i32, %arg1: i32) -> (i32, i32, i32) {
    %c0_i32 = arith.constant 0 : i32
    %c0_i32_0 = arith.constant 0 : i32
    return %arg0, %arg1, %c0_i32 : i32, i32, i32
  }
}

</mosaic_0001>

<llo_original>
// kernel: camera_specific_transform_batch.1
$region0: #{camera_specific_transform_batch.1}
  #allocation0 [shape = 'u32[]', space=smem, size = 0x4, offset = 0x4, fixed_abs, tag = 'smem constant byte address 0x4 - core index']
  #allocation1 [shape = 'u32[144,128]{1,0:T(1,128)}', space=vmem, size = 0x12000, scoped, tag = 'internal scratch']
  %s0 = inlined_call_operand.vmem [shape: u8[4,32,1664], index: 0, kind: input, shape index: {}]
  %s1 = inlined_call_operand.hbm [shape: f32[4,1664,256], index: 1, kind: input, shape index: {}]
  %s2 = inlined_call_operand.vmem [shape: f32[4,32,256], index: 2, kind: output, shape index: {}]
  %s3 = sld [smem:[#allocation0]]
  $region45: #{camera_specific_transform_batch.1} parent=0
    _
  %s5 = ssub.s32 1, %s3
  %s6 = scalar_select 0, %s5, %s3
  $region1: #{camera_specific_transform_batch.1} parent=0
    #allocation2 [shape = 'u8[3407872]{0}', space=vmem, size = 0x340000, scoped, tag = 'input window, operand 1']
    #allocation3 [shape = 's32[2]{0}', space=sflag, size = 0x8, scoped, tag = 'scoped memory for camera_specific_transform_batch.1']
    %7 = vsyncpa [#allocation3], 0
    %s8 = scalar_lea.sflag [#allocation3], 1
    %9 = vsyncpa %s8, 0
    loop: start=0, step=1, limit=6
    $region2: #{camera_specific_transform_batch.1} parent=1 // loop_pre_header
      _
    $region3: #{camera_specific_transform_batch.1} parent=1 // loop_header
      %s11 = sphi 0, %s15
      %p12 = scmp.ge.s32.totalorder %s11, 6
      %s18 = sphi 0, %s30
      %s19 = sphi 0, %s26
      %s20 = sphi 0, %s18
      %s21 = sphi 0, %s19
      %s22 = sphi 0, %s20
      %s23 = sphi 0, %s21
      %s35 = sphi 0, %s37
      %s38 = sphi 0, %s35
      %s39 = sphi 0, %s38
      %s55 = sphi 0, %s39
      %s61 = sphi 0, %s63
      %s64 = sphi 0, %s61
      %s65 = sphi 0, %s64
      %s81 = sphi 0, %s65
      %s89 = sphi 0, %s91
      %s92 = sphi 0, %s89
      %s93 = sphi 0, %s92
      %s109 = sphi 0, %s93
    $region4: #{camera_specific_transform_batch.1} parent=1 // loop_header_branch
      %14 = sbr.rel (%p12) target = $region8
    $region5: #{camera_specific_transform_batch.1} parent=1 // loop_body
      %s16 = ssub.s32 %s11, 1
      %s17 = ssub.s32 %s11, 2
      %s24 = sadd.s32 1, %s19
      %p25 = scmp.ge.s32.totalorder %s24, 1
      %s26 = scalar_select %p25, 0, %s24
      %s27 = sadd.s32 1, %s18
      %s28 = scalar_select %p25, %s27, %s18
      %p29 = scmp.ge.s32.totalorder %s28, 4
      %s30 = scalar_select %p29, 0, %s28
      %s31 = ssub.s32 %s18, %s30
      %s32 = ssub.s32 %s19, %s26
      %s33 = sor.u32 %s31, %s32
      %p34 = scmp.eq.s32.totalorder %s33, 0
      %s36 = sadd.s32 %s35, 1
      %s37 = scalar_select %p34, %s35, %s36
      %p40 = pneg %p34
      %p41 = scmp.eq.s32.totalorder %s11, 3
      %p42 = por %p40, %p41
      %p43 = scmp.ne.s32.totalorder %s35, %s38
      %p44 = scmp.eq.s32.totalorder %s11, 0
      %p45 = por %p43, %p44
      %p46 = scmp.ne.s32.totalorder %s35, %s38
      %p47 = scmp.eq.s32.totalorder %s16, 3
      %p48 = por %p46, %p47
      %p49 = scmp.ne.s32.totalorder %s38, %s39
      %p50 = scmp.eq.s32.totalorder %s16, 0
      %p51 = por %p49, %p50
      %p52 = scmp.ne.s32.totalorder %s38, %s39
      %p53 = scmp.eq.s32.totalorder %s17, 3
      %p54 = por %p52, %p53
      %p56 = scmp.ne.s32.totalorder %s39, %s55
      %p57 = scmp.eq.s32.totalorder %s17, 0
      %p58 = por %p56, %p57
      %s59 = ssub.s32 %s18, %s30
      %p60 = scmp.eq.s32.totalorder %s59, 0
      %s62 = sadd.s32 %s61, 1
      %s63 = scalar_select %p60, %s61, %s62
      %p66 = pneg %p60
      %p67 = scmp.eq.s32.totalorder %s11, 3
      %p68 = por %p66, %p67
      %p69 = scmp.ne.s32.totalorder %s61, %s64
      %p70 = scmp.eq.s32.totalorder %s11, 0
      %p71 = por %p69, %p70
      %p72 = scmp.ne.s32.totalorder %s61, %s64
      %p73 = scmp.eq.s32.totalorder %s16, 3
      %p74 = por %p72, %p73
      %p75 = scmp.ne.s32.totalorder %s64, %s65
      %p76 = scmp.eq.s32.totalorder %s16, 0
      %p77 = por %p75, %p76
      %p78 = scmp.ne.s32.totalorder %s64, %s65
      %p79 = scmp.eq.s32.totalorder %s17, 3
      %p80 = por %p78, %p79
      %p82 = scmp.ne.s32.totalorder %s65, %s81
      %p83 = scmp.eq.s32.totalorder %s17, 0
      %p84 = por %p82, %p83
      %s85 = ssub.s32 %s18, %s30
      %s86 = ssub.s32 %s19, %s26
      %s87 = sor.u32 %s85, %s86
      %p88 = scmp.eq.s32.totalorder %s87, 0
      %s90 = sadd.s32 %s89, 1
      %s91 = scalar_select %p88, %s89, %s90
      %p94 = pneg %p88
      %p95 = scmp.eq.s32.totalorder %s11, 3
      %p96 = por %p94, %p95
      %p97 = scmp.ne.s32.totalorder %s89, %s92
      %p98 = scmp.eq.s32.totalorder %s11, 0
      %p99 = por %p97, %p98
      %p100 = scmp.ne.s32.totalorder %s89, %s92
      %p101 = scmp.eq.s32.totalorder %s16, 3
      %p102 = por %p100, %p101
      %p103 = scmp.ne.s32.totalorder %s92, %s93
      %p104 = scmp.eq.s32.totalorder %s16, 0
      %p105 = por %p103, %p104
      %p106 = scmp.ne.s32.totalorder %s92, %s93
      %p107 = scmp.eq.s32.totalorder %s17, 3
      %p108 = por %p106, %p107
      %p110 = scmp.ne.s32.totalorder %s93, %s109
      %p111 = scmp.eq.s32.totalorder %s17, 0
      %p112 = por %p110, %p111
      %p113 = scmp.le.s32.totalorder 1, %s11
      %p114 = scmp.lt.s32.totalorder %s11, 5
      %p115 = pnand %p113, %p114
      %p116 = pneg %p115
      // Predicated region
      $region9: #{camera_specific_transform_batch.1} parent=5 // pred_check
        _
      $region10: #{camera_specific_transform_batch.1} parent=5 // pred_check_branch
        %118 = sbr.rel (%p115) target = $region12
      $region11: #{camera_specific_transform_batch.1} parent=5 // pred_region
        %s119 = ssub.s32 %s11, 1
      $region12: #{camera_specific_transform_batch.1} parent=5 // pred_fallthru
        _
      %p120 = scmp.lt.s32.totalorder %s11, 4
      // Predicated region
      $region13: #{camera_specific_transform_batch.1} parent=5 // pred_check
        %p121 = pneg %p120
      $region14: #{camera_specific_transform_batch.1} parent=5 // pred_check_branch
        %123 = sbr.rel (%p121) target = $region16
      $region15: #{camera_specific_transform_batch.1} parent=5 // pred_region
        // Predicated region
        $region17: #{camera_specific_transform_batch.1} parent=15 // pred_check
          %p124 = pneg %p45
        $region18: #{camera_specific_transform_batch.1} parent=15 // pred_check_branch
          %126 = sbr.rel (%p124) target = $region20
        $region19: #{camera_specific_transform_batch.1} parent=15 // pred_region
          %p127 = scmp.lt.s32.totalorder %s18, 3
          %s128 = scalar_select %p127, %s18, 3
          %p129 = scmp.lt.s32.totalorder %s19, 0
          %s130 = scalar_select %p129, %s19, 0
          %s131 = smul.addr %s130, 13
          %s132 = smul.addr %s128, 13
          %s133 = sadd.s32 %s131, %s132
          %s134 = smul.addr %s133, 8
          %s135 = scalar_lea.vmem %s0, %s134
        $region20: #{camera_specific_transform_batch.1} parent=15 // pred_fallthru
          _
        // Predicated region
        $region21: #{camera_specific_transform_batch.1} parent=15 // pred_check
          %p136 = pneg %p71
        $region22: #{camera_specific_transform_batch.1} parent=15 // pred_check_branch
          %138 = sbr.rel (%p136) target = $region24
        $region23: #{camera_specific_transform_batch.1} parent=15 // pred_region
          %s139 = sand.u32 %s61, 1
          %s140 = scalar_lea.sflag [#allocation3], %s139
          %s141 = sand.u32 %s61, 1
          %s142 = smul.addr %s141, 3328
          %s143 = scalar_lea.vmem [#allocation2], %s142
          %s145 = ssub.s32 53248, 53248
          %146 = vsyncadd %s140, %s145
          %s147 = smul.addr %s18, 416
          %s148 = smul.addr %s147, 128
          %s149 = scalar_lea.hbm %s1, %s148
          %s150 = sshll.u32 %s143, 4
          %s151 = int_to_ptr.vmem [resolvable:$true] %s150
          %156 = dma.hbm_to_vmem [thread:$0]  %s149, 53248, %s151, %s140, 256, 256, 16
        $region24: #{camera_specific_transform_batch.1} parent=15 // pred_fallthru
          _
      $region16: #{camera_specific_transform_batch.1} parent=5 // pred_fallthru
        _
      %p157 = scmp.le.s32.totalorder 1, %s11
      %p158 = scmp.lt.s32.totalorder %s11, 5
      %p159 = pnand %p157, %p158
      %p160 = pneg %p159
      // Predicated region
      $region25: #{camera_specific_transform_batch.1} parent=5 // pred_check
        _
      $region26: #{camera_specific_transform_batch.1} parent=5 // pred_check_branch
        %162 = sbr.rel (%p159) target = $region28
      $region27: #{camera_specific_transform_batch.1} parent=5 // pred_region
        %s163 = ssub.s32 %s11, 1
        %s164 = sand.u32 %s64, 1
        %s165 = scalar_lea.sflag [#allocation3], %s164
        %s166 = sand.u32 %s64, 1
        %s167 = smul.addr %s166, 3328
        %s168 = scalar_lea.vmem [#allocation2], %s167
        // Predicated region
        $region29: #{camera_specific_transform_batch.1} parent=27 // pred_check
          %p169 = pneg %p77
        $region30: #{camera_specific_transform_batch.1} parent=27 // pred_check_branch
          %171 = sbr.rel (%p169) target = $region32
        $region31: #{camera_specific_transform_batch.1} parent=27 // pred_region
          %172 = dma.done %s165, 53248
        $region32: #{camera_specific_transform_batch.1} parent=27 // pred_fallthru
          _
        %p173 = scmp.lt.s32.totalorder %s20, 3
        %s174 = scalar_select %p173, %s20, 3
        %p175 = scmp.lt.s32.totalorder %s21, 0
        %s176 = scalar_select %p175, %s21, 0
        %s177 = smul.addr %s176, 13
        %s178 = smul.addr %s174, 13
        %s179 = sadd.s32 %s177, %s178
        %s180 = smul.addr %s179, 8
        %s181 = scalar_lea.vmem %s0, %s180
        %p182 = pneg %p51
        %p183 = pneg %p48
        %s184 = sand.u32 %s64, 1
        %s185 = scalar_lea.sflag [#allocation3], %s184
        %s186 = sand.u32 %s64, 1
        %s187 = smul.addr %s186, 3328
        %s188 = scalar_lea.vmem [#allocation2], %s187
        %p189 = pneg %p77
        %p190 = pneg %p74
        %p191 = pneg %p105
        %p192 = pneg %p102
        %s193 = smul.u32 4, %s21
        %p194 = scmp.lt.s32.totalorder %s20, 3
        %s195 = scalar_select %p194, %s20, 3
        %p196 = scmp.lt.s32.totalorder %s193, 3
        %s197 = scalar_select %p196, %s193, 3
        %s198 = smul.addr %s197, 2
        %s199 = smul.addr %s195, 8
        %s200 = sadd.s32 %s198, %s199
        %s201 = smul.addr %s200, 8
        %s202 = scalar_lea.vmem %s2, %s201
        %p203 = scmp.lt.s32.totalorder %s20, 3
        %s204 = scalar_select %p203, %s20, 3
        %p205 = scmp.lt.s32.totalorder %s21, 0
        %s206 = scalar_select %p205, %s21, 0
        %s207 = smul.addr %s206, 13
        %s208 = smul.addr %s204, 13
        %s209 = sadd.s32 %s207, %s208
        %s210 = smul.addr %s209, 8
        %s211 = scalar_lea.vmem %s0, %s210
        %s212 = smul.u32 4, %s21
        %p213 = scmp.lt.s32.totalorder %s20, 3
        %s214 = scalar_select %p213, %s20, 3
        %p215 = scmp.lt.s32.totalorder %s212, 3
        %s216 = scalar_select %p215, %s212, 3
        %s217 = smul.addr %s216, 2
        %s218 = smul.addr %s214, 8
        %s219 = sadd.s32 %s217, %s218
        %s220 = smul.addr %s219, 8
        %s221 = scalar_lea.vmem %s2, %s220
        %s222 = smul.u32 4, %s21
        %v223 = vld [vmem:[%s211] sm:$0xff]
        %v224 = vld [vmem:[%s211 + $0x8] sm:$0xff]
        %v225 = vld [vmem:[%s211 + $0x10] sm:$0xff]
        %v226 = vld [vmem:[%s211 + $0x18] sm:$0xff]
        %v227 = vld [vmem:[%s211 + $0x20] sm:$0xff]
        %v228 = vld [vmem:[%s211 + $0x28] sm:$0xff]
        %v229 = vld [vmem:[%s211 + $0x30] sm:$0xff]
        %v230 = vld [vmem:[%s211 + $0x38] sm:$0xff]
        %v231 = vld [vmem:[%s211 + $0x40] sm:$0xff]
        %v232 = vld [vmem:[%s211 + $0x48] sm:$0xff]
        %v233 = vld [vmem:[%s211 + $0x50] sm:$0xff]
        %v234 = vld [vmem:[%s211 + $0x58] sm:$0xff]
        %v235 = vld [vmem:[%s211 + $0x60] sm:$0xff]
        %v236 = vunpack.c.0.s8 %v223
        %v237 = vunpack.c.0.s8 %v224
        %v238 = vunpack.c.0.s8 %v225
        %v239 = vunpack.c.0.s8 %v226
        %v240 = vunpack.c.0.s8 %v227
        %v241 = vunpack.c.0.s8 %v228
        %v242 = vunpack.c.0.s8 %v229
        %v243 = vunpack.c.0.s8 %v230
        %v244 = vunpack.c.0.s8 %v231
        %v245 = vunpack.c.0.s8 %v232
        %v246 = vunpack.c.0.s8 %v233
        %v247 = vunpack.c.0.s8 %v234
        %v248 = vunpack.c.0.s8 %v235
        %v249 = vunpack.c.1.s8 %v223
        %v250 = vunpack.c.1.s8 %v224
        %v251 = vunpack.c.1.s8 %v225
        %v252 = vunpack.c.1.s8 %v226
        %v253 = vunpack.c.1.s8 %v227
        %v254 = vunpack.c.1.s8 %v228
        %v255 = vunpack.c.1.s8 %v229
        %v256 = vunpack.c.1.s8 %v230
        %v257 = vunpack.c.1.s8 %v231
        %v258 = vunpack.c.1.s8 %v232
        %v259 = vunpack.c.1.s8 %v233
        %v260 = vunpack.c.1.s8 %v234
        %v261 = vunpack.c.1.s8 %v235
        %v262 = vunpack.c.2.s8 %v223
        %v263 = vunpack.c.2.s8 %v224
        %v264 = vunpack.c.2.s8 %v225
        %v265 = vunpack.c.2.s8 %v226
        %v266 = vunpack.c.2.s8 %v227
        %v267 = vunpack.c.2.s8 %v228
        %v268 = vunpack.c.2.s8 %v229
        %v269 = vunpack.c.2.s8 %v230
        %v270 = vunpack.c.2.s8 %v231
        %v271 = vunpack.c.2.s8 %v232
        %v272 = vunpack.c.2.s8 %v233
        %v273 = vunpack.c.2.s8 %v234
        %v274 = vunpack.c.2.s8 %v235
        %v275 = vunpack.c.3.s8 %v223
        %v276 = vunpack.c.3.s8 %v224
        %v277 = vunpack.c.3.s8 %v225
        %v278 = vunpack.c.3.s8 %v226
        %v279 = vunpack.c.3.s8 %v227
        %v280 = vunpack.c.3.s8 %v228
        %v281 = vunpack.c.3.s8 %v229
        %v282 = vunpack.c.3.s8 %v230
        %v283 = vunpack.c.3.s8 %v231
        %v284 = vunpack.c.3.s8 %v232
        %v285 = vunpack.c.3.s8 %v233
        %v286 = vunpack.c.3.s8 %v234
        %v287 = vunpack.c.3.s8 %v235
        %v288 = vand.u32 %v236, 255
        %v289 = vand.u32 %v237, 255
        %v290 = vand.u32 %v238, 255
        %v291 = vand.u32 %v239, 255
        %v292 = vand.u32 %v240, 255
        %v293 = vand.u32 %v241, 255
        %v294 = vand.u32 %v242, 255
        %v295 = vand.u32 %v243, 255
        %v296 = vand.u32 %v244, 255
        %v297 = vand.u32 %v245, 255
        %v298 = vand.u32 %v246, 255
        %v299 = vand.u32 %v247, 255
        %v300 = vand.u32 %v248, 255
        %v301 = vand.u32 %v249, 255
        %v302 = vand.u32 %v250, 255
        %v303 = vand.u32 %v251, 255
        %v304 = vand.u32 %v252, 255
        %v305 = vand.u32 %v253, 255
        %v306 = vand.u32 %v254, 255
        %v307 = vand.u32 %v255, 255
        %v308 = vand.u32 %v256, 255
        %v309 = vand.u32 %v257, 255
        %v310 = vand.u32 %v258, 255
        %v311 = vand.u32 %v259, 255
        %v312 = vand.u32 %v260, 255
        %v313 = vand.u32 %v261, 255
        %v314 = vand.u32 %v262, 255
        %v315 = vand.u32 %v263, 255
        %v316 = vand.u32 %v264, 255
        %v317 = vand.u32 %v265, 255
        %v318 = vand.u32 %v266, 255
        %v319 = vand.u32 %v267, 255
        %v320 = vand.u32 %v268, 255
        %v321 = vand.u32 %v269, 255
        %v322 = vand.u32 %v270, 255
        %v323 = vand.u32 %v271, 255
        %v324 = vand.u32 %v272, 255
        %v325 = vand.u32 %v273, 255
        %v326 = vand.u32 %v274, 255
        %v327 = vand.u32 %v275, 255
        %v328 = vand.u32 %v276, 255
        %v329 = vand.u32 %v277, 255
        %v330 = vand.u32 %v278, 255
        %v331 = vand.u32 %v279, 255
        %v332 = vand.u32 %v280, 255
        %v333 = vand.u32 %v281, 255
        %v334 = vand.u32 %v282, 255
        %v335 = vand.u32 %v283, 255
        %v336 = vand.u32 %v284, 255
        %v337 = vand.u32 %v285, 255
        %v338 = vand.u32 %v286, 255
        %v339 = vand.u32 %v287, 255
        %v340 = vcvt.s32.f32 %v288
        %v341 = vcvt.s32.f32 %v289
        %v342 = vcvt.s32.f32 %v290
        %v343 = vcvt.s32.f32 %v291
        %v344 = vcvt.s32.f32 %v292
        %v345 = vcvt.s32.f32 %v293
        %v346 = vcvt.s32.f32 %v294
        %v347 = vcvt.s32.f32 %v295
        %v348 = vcvt.s32.f32 %v296
        %v349 = vcvt.s32.f32 %v297
        %v350 = vcvt.s32.f32 %v298
        %v351 = vcvt.s32.f32 %v299
        %v352 = vcvt.s32.f32 %v300
        %v353 = vcvt.s32.f32 %v301
        %v354 = vcvt.s32.f32 %v302
        %v355 = vcvt.s32.f32 %v303
        %v356 = vcvt.s32.f32 %v304
        %v357 = vcvt.s32.f32 %v305
        %v358 = vcvt.s32.f32 %v306
        %v359 = vcvt.s32.f32 %v307
        %v360 = vcvt.s32.f32 %v308
        %v361 = vcvt.s32.f32 %v309
        %v362 = vcvt.s32.f32 %v310
        %v363 = vcvt.s32.f32 %v311
        %v364 = vcvt.s32.f32 %v312
        %v365 = vcvt.s32.f32 %v313
        %v366 = vcvt.s32.f32 %v314
        %v367 = vcvt.s32.f32 %v315
        %v368 = vcvt.s32.f32 %v316
        %v369 = vcvt.s32.f32 %v317
        %v370 = vcvt.s32.f32 %v318
        %v371 = vcvt.s32.f32 %v319
        %v372 = vcvt.s32.f32 %v320
        %v373 = vcvt.s32.f32 %v321
        %v374 = vcvt.s32.f32 %v322
        %v375 = vcvt.s32.f32 %v323
        %v376 = vcvt.s32.f32 %v324
        %v377 = vcvt.s32.f32 %v325
        %v378 = vcvt.s32.f32 %v326
        %v379 = vcvt.s32.f32 %v327
        %v380 = vcvt.s32.f32 %v328
        %v381 = vcvt.s32.f32 %v329
        %v382 = vcvt.s32.f32 %v330
        %v383 = vcvt.s32.f32 %v331
        %v384 = vcvt.s32.f32 %v332
        %v385 = vcvt.s32.f32 %v333
        %v386 = vcvt.s32.f32 %v334
        %v387 = vcvt.s32.f32 %v335
        %v388 = vcvt.s32.f32 %v336
        %v389 = vcvt.s32.f32 %v337
        %v390 = vcvt.s32.f32 %v338
        %v391 = vcvt.s32.f32 %v339
        %v392 = vld [vmem:[%s168] sm:$0xff]
        %v393 = vld [vmem:[%s168 + $0x8] sm:$0xff]
        %v394 = vld [vmem:[%s168 + $0x10] sm:$0xff]
        %v395 = vld [vmem:[%s168 + $0x18] sm:$0xff]
        %v396 = vld [vmem:[%s168 + $0x20] sm:$0xff]
        %v397 = vld [vmem:[%s168 + $0x28] sm:$0xff]
        %v398 = vld [vmem:[%s168 + $0x30] sm:$0xff]
        %v399 = vld [vmem:[%s168 + $0x38] sm:$0xff]
        %v400 = vld [vmem:[%s168 + $0x40] sm:$0xff]
        %v401 = vld [vmem:[%s168 + $0x48] sm:$0xff]
        %v402 = vld [vmem:[%s168 + $0x50] sm:$0xff]
        %v403 = vld [vmem:[%s168 + $0x58] sm:$0xff]
        %v404 = vld [vmem:[%s168 + $0x60] sm:$0xff]
        %v405 = vld [vmem:[%s168 + $0x68] sm:$0xff]
        %v406 = vld [vmem:[%s168 + $0x70] sm:$0xff]
        %v407 = vld [vmem:[%s168 + $0x78] sm:$0xff]
        %v408 = vld [vmem:[%s168 + $0x80] sm:$0xff]
        %v409 = vld [vmem:[%s168 + $0x88] sm:$0xff]
        %v410 = vld [vmem:[%s168 + $0x90] sm:$0xff]
        %v411 = vld [vmem:[%s168 + $0x98] sm:$0xff]
        %v412 = vld [vmem:[%s168 + $0xa0] sm:$0xff]
        %v413 = vld [vmem:[%s168 + $0xa8] sm:$0xff]
        %v414 = vld [vmem:[%s168 + $0xb0] sm:$0xff]
        %v415 = vld [vmem:[%s168 + $0xb8] sm:$0xff]
        %v416 = vld [vmem:[%s168 + $0xc0] sm:$0xff]
        %v417 = vld [vmem:[%s168 + $0xc8] sm:$0xff]
        %v418 = vld [vmem:[%s168 + $0xd0] sm:$0xff]
        %v419 = vld [vmem:[%s168 + $0xd8] sm:$0xff]
        %v420 = vld [vmem:[%s168 + $0xe0] sm:$0xff]
        %v421 = vld [vmem:[%s168 + $0xe8] sm:$0xff]
        %v422 = vld [vmem:[%s168 + $0xf0] sm:$0xff]
        %v423 = vld [vmem:[%s168 + $0xf8] sm:$0xff]
        %v424 = vld [vmem:[%s168 + $0x100] sm:$0xff]
        %v425 = vld [vmem:[%s168 + $0x108] sm:$0xff]
        %v426 = vld [vmem:[%s168 + $0x110] sm:$0xff]
        %v427 = vld [vmem:[%s168 + $0x118] sm:$0xff]
        %v428 = vld [vmem:[%s168 + $0x120] sm:$0xff]
        %v429 = vld [vmem:[%s168 + $0x128] sm:$0xff]
        %v430 = vld [vmem:[%s168 + $0x130] sm:$0xff]
        %v431 = vld [vmem:[%s168 + $0x138] sm:$0xff]
        %v432 = vld [vmem:[%s168 + $0x140] sm:$0xff]
        %v433 = vld [vmem:[%s168 + $0x148] sm:$0xff]
        %v434 = vld [vmem:[%s168 + $0x150] sm:$0xff]
        %v435 = vld [vmem:[%s168 + $0x158] sm:$0xff]
        %v436 = vld [vmem:[%s168 + $0x160] sm:$0xff]
        %v437 = vld [vmem:[%s168 + $0x168] sm:$0xff]
        %v438 = vld [vmem:[%s168 + $0x170] sm:$0xff]
        %v439 = vld [vmem:[%s168 + $0x178] sm:$0xff]
        %v440 = vld [vmem:[%s168 + $0x180] sm:$0xff]
        %v441 = vld [vmem:[%s168 + $0x188] sm:$0xff]
        %v442 = vld [vmem:[%s168 + $0x190] sm:$0xff]
        %v443 = vld [vmem:[%s168 + $0x198] sm:$0xff]
        %v444 = vld [vmem:[%s168 + $0x1a0] sm:$0xff]
        %v445 = vld [vmem:[%s168 + $0x1a8] sm:$0xff]
        %v446 = vld [vmem:[%s168 + $0x1b0] sm:$0xff]
        %v447 = vld [vmem:[%s168 + $0x1b8] sm:$0xff]
        %v448 = vld [vmem:[%s168 + $0x1c0] sm:$0xff]
        %v449 = vld [vmem:[%s168 + $0x1c8] sm:$0xff]
        %v450 = vld [vmem:[%s168 + $0x1d0] sm:$0xff]
        %v451 = vld [vmem:[%s168 + $0x1d8] sm:$0xff]
        %v452 = vld [vmem:[%s168 + $0x1e0] sm:$0xff]
        %v453 = vld [vmem:[%s168 + $0x1e8] sm:$0xff]
        %v454 = vld [vmem:[%s168 + $0x1f0] sm:$0xff]
        %v455 = vld [vmem:[%s168 + $0x1f8] sm:$0xff]
        %v456 = vld [vmem:[%s168 + $0x200] sm:$0xff]
        %v457 = vld [vmem:[%s168 + $0x208] sm:$0xff]
        %v458 = vld [vmem:[%s168 + $0x210] sm:$0xff]
        %v459 = vld [vmem:[%s168 + $0x218] sm:$0xff]
        %v460 = vld [vmem:[%s168 + $0x220] sm:$0xff]
        %v461 = vld [vmem:[%s168 + $0x228] sm:$0xff]
        %v462 = vld [vmem:[%s168 + $0x230] sm:$0xff]
        %v463 = vld [vmem:[%s168 + $0x238] sm:$0xff]
        %v464 = vld [vmem:[%s168 + $0x240] sm:$0xff]
        %v465 = vld [vmem:[%s168 + $0x248] sm:$0xff]
        %v466 = vld [vmem:[%s168 + $0x250] sm:$0xff]
        %v467 = vld [vmem:[%s168 + $0x258] sm:$0xff]
        %v468 = vld [vmem:[%s168 + $0x260] sm:$0xff]
        %v469 = vld [vmem:[%s168 + $0x268] sm:$0xff]
        %v470 = vld [vmem:[%s168 + $0x270] sm:$0xff]
        %v471 = vld [vmem:[%s168 + $0x278] sm:$0xff]
        %v472 = vld [vmem:[%s168 + $0x280] sm:$0xff]
        %v473 = vld [vmem:[%s168 + $0x288] sm:$0xff]
        %v474 = vld [vmem:[%s168 + $0x290] sm:$0xff]
        %v475 = vld [vmem:[%s168 + $0x298] sm:$0xff]
        %v476 = vld [vmem:[%s168 + $0x2a0] sm:$0xff]
        %v477 = vld [vmem:[%s168 + $0x2a8] sm:$0xff]
        %v478 = vld [vmem:[%s168 + $0x2b0] sm:$0xff]
        %v479 = vld [vmem:[%s168 + $0x2b8] sm:$0xff]
        %v480 = vld [vmem:[%s168 + $0x2c0] sm:$0xff]
        %v481 = vld [vmem:[%s168 + $0x2c8] sm:$0xff]
        %v482 = vld [vmem:[%s168 + $0x2d0] sm:$0xff]
        %v483 = vld [vmem:[%s168 + $0x2d8] sm:$0xff]
        %v484 = vld [vmem:[%s168 + $0x2e0] sm:$0xff]
        %v485 = vld [vmem:[%s168 + $0x2e8] sm:$0xff]
        %v486 = vld [vmem:[%s168 + $0x2f0] sm:$0xff]
        %v487 = vld [vmem:[%s168 + $0x2f8] sm:$0xff]
        %v488 = vld [vmem:[%s168 + $0x300] sm:$0xff]
        %v489 = vld [vmem:[%s168 + $0x308] sm:$0xff]
        %v490 = vld [vmem:[%s168 + $0x310] sm:$0xff]
        %v491 = vld [vmem:[%s168 + $0x318] sm:$0xff]
        %v492 = vld [vmem:[%s168 + $0x320] sm:$0xff]
        %v493 = vld [vmem:[%s168 + $0x328] sm:$0xff]
        %v494 = vld [vmem:[%s168 + $0x330] sm:$0xff]
        %v495 = vld [vmem:[%s168 + $0x338] sm:$0xff]
        %v496 = vld [vmem:[%s168 + $0x340] sm:$0xff]
        %v497 = vld [vmem:[%s168 + $0x348] sm:$0xff]
        %v498 = vld [vmem:[%s168 + $0x350] sm:$0xff]
        %v499 = vld [vmem:[%s168 + $0x358] sm:$0xff]
        %v500 = vld [vmem:[%s168 + $0x360] sm:$0xff]
        %v501 = vld [vmem:[%s168 + $0x368] sm:$0xff]
        %v502 = vld [vmem:[%s168 + $0x370] sm:$0xff]
        %v503 = vld [vmem:[%s168 + $0x378] sm:$0xff]
        %v504 = vld [vmem:[%s168 + $0x380] sm:$0xff]
        %v505 = vld [vmem:[%s168 + $0x388] sm:$0xff]
        %v506 = vld [vmem:[%s168 + $0x390] sm:$0xff]
        %v507 = vld [vmem:[%s168 + $0x398] sm:$0xff]
        %v508 = vld [vmem:[%s168 + $0x3a0] sm:$0xff]
        %v509 = vld [vmem:[%s168 + $0x3a8] sm:$0xff]
        %v510 = vld [vmem:[%s168 + $0x3b0] sm:$0xff]
        %v511 = vld [vmem:[%s168 + $0x3b8] sm:$0xff]
        %v512 = vld [vmem:[%s168 + $0x3c0] sm:$0xff]
        %v513 = vld [vmem:[%s168 + $0x3c8] sm:$0xff]
        %v514 = vld [vmem:[%s168 + $0x3d0] sm:$0xff]
        %v515 = vld [vmem:[%s168 + $0x3d8] sm:$0xff]
        %v516 = vld [vmem:[%s168 + $0x3e0] sm:$0xff]
        %v517 = vld [vmem:[%s168 + $0x3e8] sm:$0xff]
        %v518 = vld [vmem:[%s168 + $0x3f0] sm:$0xff]
        %v519 = vld [vmem:[%s168 + $0x3f8] sm:$0xff]
        %v520 = vld [vmem:[%s168 + $0x400] sm:$0xff]
        %v521 = vld [vmem:[%s168 + $0x408] sm:$0xff]
        %v522 = vld [vmem:[%s168 + $0x410] sm:$0xff]
        %v523 = vld [vmem:[%s168 + $0x418] sm:$0xff]
        %v524 = vld [vmem:[%s168 + $0x420] sm:$0xff]
        %v525 = vld [vmem:[%s168 + $0x428] sm:$0xff]
        %v526 = vld [vmem:[%s168 + $0x430] sm:$0xff]
        %v527 = vld [vmem:[%s168 + $0x438] sm:$0xff]
        %v528 = vld [vmem:[%s168 + $0x440] sm:$0xff]
        %v529 = vld [vmem:[%s168 + $0x448] sm:$0xff]
        %v530 = vld [vmem:[%s168 + $0x450] sm:$0xff]
        %v531 = vld [vmem:[%s168 + $0x458] sm:$0xff]
        %v532 = vld [vmem:[%s168 + $0x460] sm:$0xff]
        %v533 = vld [vmem:[%s168 + $0x468] sm:$0xff]
        %v534 = vld [vmem:[%s168 + $0x470] sm:$0xff]
        %v535 = vld [vmem:[%s168 + $0x478] sm:$0xff]
        %v536 = vld [vmem:[%s168 + $0x480] sm:$0xff]
        %v537 = vld [vmem:[%s168 + $0x488] sm:$0xff]
        %v538 = vld [vmem:[%s168 + $0x490] sm:$0xff]
        %v539 = vld [vmem:[%s168 + $0x498] sm:$0xff]
        %v540 = vld [vmem:[%s168 + $0x4a0] sm:$0xff]
        %v541 = vld [vmem:[%s168 + $0x4a8] sm:$0xff]
        %v542 = vld [vmem:[%s168 + $0x4b0] sm:$0xff]
        %v543 = vld [vmem:[%s168 + $0x4b8] sm:$0xff]
        %v544 = vld [vmem:[%s168 + $0x4c0] sm:$0xff]
        %v545 = vld [vmem:[%s168 + $0x4c8] sm:$0xff]
        %v546 = vld [vmem:[%s168 + $0x4d0] sm:$0xff]
        %v547 = vld [vmem:[%s168 + $0x4d8] sm:$0xff]
        %v548 = vld [vmem:[%s168 + $0x4e0] sm:$0xff]
        %v549 = vld [vmem:[%s168 + $0x4e8] sm:$0xff]
        %v550 = vld [vmem:[%s168 + $0x4f0] sm:$0xff]
        %v551 = vld [vmem:[%s168 + $0x4f8] sm:$0xff]
        %v552 = vld [vmem:[%s168 + $0x500] sm:$0xff]
        %v553 = vld [vmem:[%s168 + $0x508] sm:$0xff]
        %v554 = vld [vmem:[%s168 + $0x510] sm:$0xff]
        %v555 = vld [vmem:[%s168 + $0x518] sm:$0xff]
        %v556 = vld [vmem:[%s168 + $0x520] sm:$0xff]
        %v557 = vld [vmem:[%s168 + $0x528] sm:$0xff]
        %v558 = vld [vmem:[%s168 + $0x530] sm:$0xff]
        %v559 = vld [vmem:[%s168 + $0x538] sm:$0xff]
        %v560 = vld [vmem:[%s168 + $0x540] sm:$0xff]
        %v561 = vld [vmem:[%s168 + $0x548] sm:$0xff]
        %v562 = vld [vmem:[%s168 + $0x550] sm:$0xff]
        %v563 = vld [vmem:[%s168 + $0x558] sm:$0xff]
        %v564 = vld [vmem:[%s168 + $0x560] sm:$0xff]
        %v565 = vld [vmem:[%s168 + $0x568] sm:$0xff]
        %v566 = vld [vmem:[%s168 + $0x570] sm:$0xff]
        %v567 = vld [vmem:[%s168 + $0x578] sm:$0xff]
        %v568 = vld [vmem:[%s168 + $0x580] sm:$0xff]
        %v569 = vld [vmem:[%s168 + $0x588] sm:$0xff]
        %v570 = vld [vmem:[%s168 + $0x590] sm:$0xff]
        %v571 = vld [vmem:[%s168 + $0x598] sm:$0xff]
        %v572 = vld [vmem:[%s168 + $0x5a0] sm:$0xff]
        %v573 = vld [vmem:[%s168 + $0x5a8] sm:$0xff]
        %v574 = vld [vmem:[%s168 + $0x5b0] sm:$0xff]
        %v575 = vld [vmem:[%s168 + $0x5b8] sm:$0xff]
        %v576 = vld [vmem:[%s168 + $0x5c0] sm:$0xff]
        %v577 = vld [vmem:[%s168 + $0x5c8] sm:$0xff]
        %v578 = vld [vmem:[%s168 + $0x5d0] sm:$0xff]
        %v579 = vld [vmem:[%s168 + $0x5d8] sm:$0xff]
        %v580 = vld [vmem:[%s168 + $0x5e0] sm:$0xff]
        %v581 = vld [vmem:[%s168 + $0x5e8] sm:$0xff]
        %v582 = vld [vmem:[%s168 + $0x5f0] sm:$0xff]
        %v583 = vld [vmem:[%s168 + $0x5f8] sm:$0xff]
        %v584 = vld [vmem:[%s168 + $0x600] sm:$0xff]
        %v585 = vld [vmem:[%s168 + $0x608] sm:$0xff]
        %v586 = vld [vmem:[%s168 + $0x610] sm:$0xff]
        %v587 = vld [vmem:[%s168 + $0x618] sm:$0xff]
        %v588 = vld [vmem:[%s168 + $0x620] sm:$0xff]
        %v589 = vld [vmem:[%s168 + $0x628] sm:$0xff]
        %v590 = vld [vmem:[%s168 + $0x630] sm:$0xff]
        %v591 = vld [vmem:[%s168 + $0x638] sm:$0xff]
        %v592 = vld [vmem:[%s168 + $0x640] sm:$0xff]
        %v593 = vld [vmem:[%s168 + $0x648] sm:$0xff]
        %v594 = vld [vmem:[%s168 + $0x650] sm:$0xff]
        %v595 = vld [vmem:[%s168 + $0x658] sm:$0xff]
        %v596 = vld [vmem:[%s168 + $0x660] sm:$0xff]
        %v597 = vld [vmem:[%s168 + $0x668] sm:$0xff]
        %v598 = vld [vmem:[%s168 + $0x670] sm:$0xff]
        %v599 = vld [vmem:[%s168 + $0x678] sm:$0xff]
        %v600 = vld [vmem:[%s168 + $0x680] sm:$0xff]
        %v601 = vld [vmem:[%s168 + $0x688] sm:$0xff]
        %v602 = vld [vmem:[%s168 + $0x690] sm:$0xff]
        %v603 = vld [vmem:[%s168 + $0x698] sm:$0xff]
        %v604 = vld [vmem:[%s168 + $0x6a0] sm:$0xff]
        %v605 = vld [vmem:[%s168 + $0x6a8] sm:$0xff]
        %v606 = vld [vmem:[%s168 + $0x6b0] sm:$0xff]
        %v607 = vld [vmem:[%s168 + $0x6b8] sm:$0xff]
        %v608 = vld [vmem:[%s168 + $0x6c0] sm:$0xff]
        %v609 = vld [vmem:[%s168 + $0x6c8] sm:$0xff]
        %v610 = vld [vmem:[%s168 + $0x6d0] sm:$0xff]
        %v611 = vld [vmem:[%s168 + $0x6d8] sm:$0xff]
        %v612 = vld [vmem:[%s168 + $0x6e0] sm:$0xff]
        %v613 = vld [vmem:[%s168 + $0x6e8] sm:$0xff]
        %v614 = vld [vmem:[%s168 + $0x6f0] sm:$0xff]
        %v615 = vld [vmem:[%s168 + $0x6f8] sm:$0xff]
        %v616 = vld [vmem:[%s168 + $0x700] sm:$0xff]
        %v617 = vld [vmem:[%s168 + $0x708] sm:$0xff]
        %v618 = vld [vmem:[%s168 + $0x710] sm:$0xff]
        %v619 = vld [vmem:[%s168 + $0x718] sm:$0xff]
        %v620 = vld [vmem:[%s168 + $0x720] sm:$0xff]
        %v621 = vld [vmem:[%s168 + $0x728] sm:$0xff]
        %v622 = vld [vmem:[%s168 + $0x730] sm:$0xff]
        %v623 = vld [vmem:[%s168 + $0x738] sm:$0xff]
        %v624 = vld [vmem:[%s168 + $0x740] sm:$0xff]
        %v625 = vld [vmem:[%s168 + $0x748] sm:$0xff]
        %v626 = vld [vmem:[%s168 + $0x750] sm:$0xff]
        %v627 = vld [vmem:[%s168 + $0x758] sm:$0xff]
        %v628 = vld [vmem:[%s168 + $0x760] sm:$0xff]
        %v629 = vld [vmem:[%s168 + $0x768] sm:$0xff]
        %v630 = vld [vmem:[%s168 + $0x770] sm:$0xff]
        %v631 = vld [vmem:[%s168 + $0x778] sm:$0xff]
        %v632 = vld [vmem:[%s168 + $0x780] sm:$0xff]
        %v633 = vld [vmem:[%s168 + $0x788] sm:$0xff]
        %v634 = vld [vmem:[%s168 + $0x790] sm:$0xff]
        %v635 = vld [vmem:[%s168 + $0x798] sm:$0xff]
        %v636 = vld [vmem:[%s168 + $0x7a0] sm:$0xff]
        %v637 = vld [vmem:[%s168 + $0x7a8] sm:$0xff]
        %v638 = vld [vmem:[%s168 + $0x7b0] sm:$0xff]
        %v639 = vld [vmem:[%s168 + $0x7b8] sm:$0xff]
        %v640 = vld [vmem:[%s168 + $0x7c0] sm:$0xff]
        %v641 = vld [vmem:[%s168 + $0x7c8] sm:$0xff]
        %v642 = vld [vmem:[%s168 + $0x7d0] sm:$0xff]
        %v643 = vld [vmem:[%s168 + $0x7d8] sm:$0xff]
        %v644 = vld [vmem:[%s168 + $0x7e0] sm:$0xff]
        %v645 = vld [vmem:[%s168 + $0x7e8] sm:$0xff]
        %v646 = vld [vmem:[%s168 + $0x7f0] sm:$0xff]
        %v647 = vld [vmem:[%s168 + $0x7f8] sm:$0xff]
        %v648 = vld [vmem:[%s168 + $0x800] sm:$0xff]
        %v649 = vld [vmem:[%s168 + $0x808] sm:$0xff]
        %v650 = vld [vmem:[%s168 + $0x810] sm:$0xff]
        %v651 = vld [vmem:[%s168 + $0x818] sm:$0xff]
        %v652 = vld [vmem:[%s168 + $0x820] sm:$0xff]
        %v653 = vld [vmem:[%s168 + $0x828] sm:$0xff]
        %v654 = vld [vmem:[%s168 + $0x830] sm:$0xff]
        %v655 = vld [vmem:[%s168 + $0x838] sm:$0xff]
        %v656 = vld [vmem:[%s168 + $0x840] sm:$0xff]
        %v657 = vld [vmem:[%s168 + $0x848] sm:$0xff]
        %v658 = vld [vmem:[%s168 + $0x850] sm:$0xff]
        %v659 = vld [vmem:[%s168 + $0x858] sm:$0xff]
        %v660 = vld [vmem:[%s168 + $0x860] sm:$0xff]
        %v661 = vld [vmem:[%s168 + $0x868] sm:$0xff]
        %v662 = vld [vmem:[%s168 + $0x870] sm:$0xff]
        %v663 = vld [vmem:[%s168 + $0x878] sm:$0xff]
        %v664 = vld [vmem:[%s168 + $0x880] sm:$0xff]
        %v665 = vld [vmem:[%s168 + $0x888] sm:$0xff]
        %v666 = vld [vmem:[%s168 + $0x890] sm:$0xff]
        %v667 = vld [vmem:[%s168 + $0x898] sm:$0xff]
        %v668 = vld [vmem:[%s168 + $0x8a0] sm:$0xff]
        %v669 = vld [vmem:[%s168 + $0x8a8] sm:$0xff]
        %v670 = vld [vmem:[%s168 + $0x8b0] sm:$0xff]
        %v671 = vld [vmem:[%s168 + $0x8b8] sm:$0xff]
        %v672 = vld [vmem:[%s168 + $0x8c0] sm:$0xff]
        %v673 = vld [vmem:[%s168 + $0x8c8] sm:$0xff]
        %v674 = vld [vmem:[%s168 + $0x8d0] sm:$0xff]
        %v675 = vld [vmem:[%s168 + $0x8d8] sm:$0xff]
        %v676 = vld [vmem:[%s168 + $0x8e0] sm:$0xff]
        %v677 = vld [vmem:[%s168 + $0x8e8] sm:$0xff]
        %v678 = vld [vmem:[%s168 + $0x8f0] sm:$0xff]
        %v679 = vld [vmem:[%s168 + $0x8f8] sm:$0xff]
        %v680 = vld [vmem:[%s168 + $0x900] sm:$0xff]
        %v681 = vld [vmem:[%s168 + $0x908] sm:$0xff]
        %v682 = vld [vmem:[%s168 + $0x910] sm:$0xff]
        %v683 = vld [vmem:[%s168 + $0x918] sm:$0xff]
        %v684 = vld [vmem:[%s168 + $0x920] sm:$0xff]
        %v685 = vld [vmem:[%s168 + $0x928] sm:$0xff]
        %v686 = vld [vmem:[%s168 + $0x930] sm:$0xff]
        %v687 = vld [vmem:[%s168 + $0x938] sm:$0xff]
        %v688 = vld [vmem:[%s168 + $0x940] sm:$0xff]
        %v689 = vld [vmem:[%s168 + $0x948] sm:$0xff]
        %v690 = vld [vmem:[%s168 + $0x950] sm:$0xff]
        %v691 = vld [vmem:[%s168 + $0x958] sm:$0xff]
        %v692 = vld [vmem:[%s168 + $0x960] sm:$0xff]
        %v693 = vld [vmem:[%s168 + $0x968] sm:$0xff]
        %v694 = vld [vmem:[%s168 + $0x970] sm:$0xff]
        %v695 = vld [vmem:[%s168 + $0x978] sm:$0xff]
        %v696 = vld [vmem:[%s168 + $0x980] sm:$0xff]
        %v697 = vld [vmem:[%s168 + $0x988] sm:$0xff]
        %v698 = vld [vmem:[%s168 + $0x990] sm:$0xff]
        %v699 = vld [vmem:[%s168 + $0x998] sm:$0xff]
        %v700 = vld [vmem:[%s168 + $0x9a0] sm:$0xff]
        %v701 = vld [vmem:[%s168 + $0x9a8] sm:$0xff]
        %v702 = vld [vmem:[%s168 + $0x9b0] sm:$0xff]
        %v703 = vld [vmem:[%s168 + $0x9b8] sm:$0xff]
        %v704 = vld [vmem:[%s168 + $0x9c0] sm:$0xff]
        %v705 = vld [vmem:[%s168 + $0x9c8] sm:$0xff]
        %v706 = vld [vmem:[%s168 + $0x9d0] sm:$0xff]
        %v707 = vld [vmem:[%s168 + $0x9d8] sm:$0xff]
        %v708 = vld [vmem:[%s168 + $0x9e0] sm:$0xff]
        %v709 = vld [vmem:[%s168 + $0x9e8] sm:$0xff]
        %v710 = vld [vmem:[%s168 + $0x9f0] sm:$0xff]
        %v711 = vld [vmem:[%s168 + $0x9f8] sm:$0xff]
        %v712 = vld [vmem:[%s168 + $0xa00] sm:$0xff]
        %v713 = vld [vmem:[%s168 + $0xa08] sm:$0xff]
        %v714 = vld [vmem:[%s168 + $0xa10] sm:$0xff]
        %v715 = vld [vmem:[%s168 + $0xa18] sm:$0xff]
        %v716 = vld [vmem:[%s168 + $0xa20] sm:$0xff]
        %v717 = vld [vmem:[%s168 + $0xa28] sm:$0xff]
        %v718 = vld [vmem:[%s168 + $0xa30] sm:$0xff]
        %v719 = vld [vmem:[%s168 + $0xa38] sm:$0xff]
        %v720 = vld [vmem:[%s168 + $0xa40] sm:$0xff]
        %v721 = vld [vmem:[%s168 + $0xa48] sm:$0xff]
        %v722 = vld [vmem:[%s168 + $0xa50] sm:$0xff]
        %v723 = vld [vmem:[%s168 + $0xa58] sm:$0xff]
        %v724 = vld [vmem:[%s168 + $0xa60] sm:$0xff]
        %v725 = vld [vmem:[%s168 + $0xa68] sm:$0xff]
        %v726 = vld [vmem:[%s168 + $0xa70] sm:$0xff]
        %v727 = vld [vmem:[%s168 + $0xa78] sm:$0xff]
        %v728 = vld [vmem:[%s168 + $0xa80] sm:$0xff]
        %v729 = vld [vmem:[%s168 + $0xa88] sm:$0xff]
        %v730 = vld [vmem:[%s168 + $0xa90] sm:$0xff]
        %v731 = vld [vmem:[%s168 + $0xa98] sm:$0xff]
        %v732 = vld [vmem:[%s168 + $0xaa0] sm:$0xff]
        %v733 = vld [vmem:[%s168 + $0xaa8] sm:$0xff]
        %v734 = vld [vmem:[%s168 + $0xab0] sm:$0xff]
        %v735 = vld [vmem:[%s168 + $0xab8] sm:$0xff]
        %v736 = vld [vmem:[%s168 + $0xac0] sm:$0xff]
        %v737 = vld [vmem:[%s168 + $0xac8] sm:$0xff]
        %v738 = vld [vmem:[%s168 + $0xad0] sm:$0xff]
        %v739 = vld [vmem:[%s168 + $0xad8] sm:$0xff]
        %v740 = vld [vmem:[%s168 + $0xae0] sm:$0xff]
        %v741 = vld [vmem:[%s168 + $0xae8] sm:$0xff]
        %v742 = vld [vmem:[%s168 + $0xaf0] sm:$0xff]
        %v743 = vld [vmem:[%s168 + $0xaf8] sm:$0xff]
        %v744 = vld [vmem:[%s168 + $0xb00] sm:$0xff]
        %v745 = vld [vmem:[%s168 + $0xb08] sm:$0xff]
        %v746 = vld [vmem:[%s168 + $0xb10] sm:$0xff]
        %v747 = vld [vmem:[%s168 + $0xb18] sm:$0xff]
        %v748 = vld [vmem:[%s168 + $0xb20] sm:$0xff]
        %v749 = vld [vmem:[%s168 + $0xb28] sm:$0xff]
        %v750 = vld [vmem:[%s168 + $0xb30] sm:$0xff]
        %v751 = vld [vmem:[%s168 + $0xb38] sm:$0xff]
        %v752 = vld [vmem:[%s168 + $0xb40] sm:$0xff]
        %v753 = vld [vmem:[%s168 + $0xb48] sm:$0xff]
        %v754 = vld [vmem:[%s168 + $0xb50] sm:$0xff]
        %v755 = vld [vmem:[%s168 + $0xb58] sm:$0xff]
        %v756 = vld [vmem:[%s168 + $0xb60] sm:$0xff]
        %v757 = vld [vmem:[%s168 + $0xb68] sm:$0xff]
        %v758 = vld [vmem:[%s168 + $0xb70] sm:$0xff]
        %v759 = vld [vmem:[%s168 + $0xb78] sm:$0xff]
        %v760 = vld [vmem:[%s168 + $0xb80] sm:$0xff]
        %v761 = vld [vmem:[%s168 + $0xb88] sm:$0xff]
        %v762 = vld [vmem:[%s168 + $0xb90] sm:$0xff]
        %v763 = vld [vmem:[%s168 + $0xb98] sm:$0xff]
        %v764 = vld [vmem:[%s168 + $0xba0] sm:$0xff]
        %v765 = vld [vmem:[%s168 + $0xba8] sm:$0xff]
        %v766 = vld [vmem:[%s168 + $0xbb0] sm:$0xff]
        %v767 = vld [vmem:[%s168 + $0xbb8] sm:$0xff]
        %v768 = vld [vmem:[%s168 + $0xbc0] sm:$0xff]
        %v769 = vld [vmem:[%s168 + $0xbc8] sm:$0xff]
        %v770 = vld [vmem:[%s168 + $0xbd0] sm:$0xff]
        %v771 = vld [vmem:[%s168 + $0xbd8] sm:$0xff]
        %v772 = vld [vmem:[%s168 + $0xbe0] sm:$0xff]
        %v773 = vld [vmem:[%s168 + $0xbe8] sm:$0xff]
        %v774 = vld [vmem:[%s168 + $0xbf0] sm:$0xff]
        %v775 = vld [vmem:[%s168 + $0xbf8] sm:$0xff]
        %v776 = vld [vmem:[%s168 + $0xc00] sm:$0xff]
        %v777 = vld [vmem:[%s168 + $0xc08] sm:$0xff]
        %v778 = vld [vmem:[%s168 + $0xc10] sm:$0xff]
        %v779 = vld [vmem:[%s168 + $0xc18] sm:$0xff]
        %v780 = vld [vmem:[%s168 + $0xc20] sm:$0xff]
        %v781 = vld [vmem:[%s168 + $0xc28] sm:$0xff]
        %v782 = vld [vmem:[%s168 + $0xc30] sm:$0xff]
        %v783 = vld [vmem:[%s168 + $0xc38] sm:$0xff]
        %v784 = vld [vmem:[%s168 + $0xc40] sm:$0xff]
        %v785 = vld [vmem:[%s168 + $0xc48] sm:$0xff]
        %v786 = vld [vmem:[%s168 + $0xc50] sm:$0xff]
        %v787 = vld [vmem:[%s168 + $0xc58] sm:$0xff]
        %v788 = vld [vmem:[%s168 + $0xc60] sm:$0xff]
        %v789 = vld [vmem:[%s168 + $0xc68] sm:$0xff]
        %v790 = vld [vmem:[%s168 + $0xc70] sm:$0xff]
        %v791 = vld [vmem:[%s168 + $0xc78] sm:$0xff]
        %v792 = vld [vmem:[%s168 + $0xc80] sm:$0xff]
        %v793 = vld [vmem:[%s168 + $0xc88] sm:$0xff]
        %v794 = vld [vmem:[%s168 + $0xc90] sm:$0xff]
        %v795 = vld [vmem:[%s168 + $0xc98] sm:$0xff]
        %v796 = vld [vmem:[%s168 + $0xca0] sm:$0xff]
        %v797 = vld [vmem:[%s168 + $0xca8] sm:$0xff]
        %v798 = vld [vmem:[%s168 + $0xcb0] sm:$0xff]
        %v799 = vld [vmem:[%s168 + $0xcb8] sm:$0xff]
        %v800 = vld [vmem:[%s168 + $0xcc0] sm:$0xff]
        %v801 = vld [vmem:[%s168 + $0xcc8] sm:$0xff]
        %v802 = vld [vmem:[%s168 + $0xcd0] sm:$0xff]
        %v803 = vld [vmem:[%s168 + $0xcd8] sm:$0xff]
        %v804 = vld [vmem:[%s168 + $0xce0] sm:$0xff]
        %v805 = vld [vmem:[%s168 + $0xce8] sm:$0xff]
        %v806 = vld [vmem:[%s168 + $0xcf0] sm:$0xff]
        %v807 = vld [vmem:[%s168 + $0xcf8] sm:$0xff]
        %808 = vmatprep.subr.mxu0 %v393
        %809 = vmatpush1.msra.mxu0 %v392
        %810 = vmatprep.subr.mxu0 %v395
        %811 = vmatpush1.msra.mxu0 %v394
        %812 = vmatprep.subr.mxu0 %v397
        %813 = vmatpush1.msra.mxu0 %v396
        %814 = vmatprep.subr.mxu0 %v399
        %815 = vmatpush1.msra.mxu0 %v398
        %816 = vmatprep.subr.mxu0 %v401
        %817 = vmatpush1.msra.mxu0 %v400
        %818 = vmatprep.subr.mxu0 %v403
        %819 = vmatpush1.msra.mxu0 %v402
        %820 = vmatprep.subr.mxu0 %v405
        %821 = vmatpush1.msra.mxu0 %v404
        %822 = vmatprep.subr.mxu0 %v407
        %823 = vmatpush1.msra.mxu0 %v406
        %824 = vmatprep.subr.mxu0 %v409
        %825 = vmatpush1.msra.mxu0 %v408
        %826 = vmatprep.subr.mxu0 %v411
        %827 = vmatpush1.msra.mxu0 %v410
        %828 = vmatprep.subr.mxu0 %v413
        %829 = vmatpush1.msra.mxu0 %v412
        %830 = vmatprep.subr.mxu0 %v415
        %831 = vmatpush1.msra.mxu0 %v414
        %832 = vmatprep.subr.mxu0 %v417
        %833 = vmatpush1.msra.mxu0 %v416
        %834 = vmatprep.subr.mxu0 %v419
        %835 = vmatpush1.msra.mxu0 %v418
        %836 = vmatprep.subr.mxu0 %v421
        %837 = vmatpush1.msra.mxu0 %v420
        %838 = vmatprep.subr.mxu0 %v423
        %839 = vmatpush1.msra.mxu0 %v422
        %840 = vmatprep.subr.mxu0 %v425
        %841 = vmatpush1.msra.mxu0 %v424
        %842 = vmatprep.subr.mxu0 %v427
        %843 = vmatpush1.msra.mxu0 %v426
        %844 = vmatprep.subr.mxu0 %v429
        %845 = vmatpush1.msra.mxu0 %v428
        %846 = vmatprep.subr.mxu0 %v431
        %847 = vmatpush1.msra.mxu0 %v430
        %848 = vmatprep.subr.mxu0 %v433
        %849 = vmatpush1.msra.mxu0 %v432
        %850 = vmatprep.subr.mxu0 %v435
        %851 = vmatpush1.msra.mxu0 %v434
        %852 = vmatprep.subr.mxu0 %v437
        %853 = vmatpush1.msra.mxu0 %v436
        %854 = vmatprep.subr.mxu0 %v439
        %855 = vmatpush1.msra.mxu0 %v438
        %856 = vmatprep.subr.mxu0 %v441
        %857 = vmatpush1.msra.mxu0 %v440
        %858 = vmatprep.subr.mxu0 %v443
        %859 = vmatpush1.msra.mxu0 %v442
        %860 = vmatprep.subr.mxu0 %v445
        %861 = vmatpush1.msra.mxu0 %v444
        %862 = vmatprep.subr.mxu0 %v447
        %863 = vmatpush1.msra.mxu0 %v446
        %864 = vmatprep.subr.mxu0 %v449
        %865 = vmatpush1.msra.mxu0 %v448
        %866 = vmatprep.subr.mxu0 %v451
        %867 = vmatpush1.msra.mxu0 %v450
        %868 = vmatprep.subr.mxu0 %v453
        %869 = vmatpush1.msra.mxu0 %v452
        %870 = vmatprep.subr.mxu0 %v455
        %871 = vmatpush1.msra.mxu0 %v454
        %872 = vmatprep.mubr.f32.mxu0 %v341
        %873 = vmatmul.mubr.f32.gmra.mrb[0].mxu0 %v340
        %v874 = vpop.f32.mrb[0].mxu0
        %v875 = vadd.f32 0.5, %v874
        %v876 = vpop.f32.mrb[0].mxu0
        %v877 = vadd.f32 0.5, %v876
        %878 = vmatprep.mubr.f32.mxu0 %v354
        %879 = vmatmul.mubr.f32.gmra.mrb[0].mxu0 %v353
        %v880 = vpop.f32.mrb[0].mxu0
        %v881 = vadd.f32 0.5, %v880
        %v882 = vpop.f32.mrb[0].mxu0
        %v883 = vadd.f32 0.5, %v882
        %884 = vmatprep.mubr.f32.mxu0 %v367
        %885 = vmatmul.mubr.f32.gmra.mrb[0].mxu0 %v366
        %v886 = vpop.f32.mrb[0].mxu0
        %v887 = vadd.f32 0.5, %v886
        %v888 = vpop.f32.mrb[0].mxu0
        %v889 = vadd.f32 0.5, %v888
        %890 = vmatprep.mubr.f32.mxu0 %v380
        %891 = vmatmul.mubr.f32.gmra.mrb[0].mxu0 %v379
        %v892 = vpop.f32.mrb[0].mxu0
        %v893 = vadd.f32 0.5, %v892
        %v894 = vpop.f32.mrb[0].mxu0
        %v895 = vadd.f32 0.5, %v894
        %896 = vdwg.mxu0
        %897 = vmatprep.subr.mxu0 %v457
        %898 = vmatpush1.msra.mxu0 %v456
        %899 = vmatprep.subr.mxu0 %v459
        %900 = vmatpush1.msra.mxu0 %v458
        %901 = vmatprep.subr.mxu0 %v461
        %902 = vmatpush1.msra.mxu0 %v460
        %903 = vmatprep.subr.mxu0 %v463
        %904 = vmatpush1.msra.mxu0 %v462
        %905 = vmatprep.subr.mxu0 %v465
        %906 = vmatpush1.msra.mxu0 %v464
        %907 = vmatprep.subr.mxu0 %v467
        %908 = vmatpush1.msra.mxu0 %v466
        %909 = vmatprep.subr.mxu0 %v469
        %910 = vmatpush1.msra.mxu0 %v468
        %911 = vmatprep.subr.mxu0 %v471
        %912 = vmatpush1.msra.mxu0 %v470
        %913 = vmatprep.subr.mxu0 %v473
        %914 = vmatpush1.msra.mxu0 %v472
        %915 = vmatprep.subr.mxu0 %v475
        %916 = vmatpush1.msra.mxu0 %v474
        %917 = vmatprep.subr.mxu0 %v477
        %918 = vmatpush1.msra.mxu0 %v476
        %919 = vmatprep.subr.mxu0 %v479
        %920 = vmatpush1.msra.mxu0 %v478
        %921 = vmatprep.subr.mxu0 %v481
        %922 = vmatpush1.msra.mxu0 %v480
        %923 = vmatprep.subr.mxu0 %v483
        %924 = vmatpush1.msra.mxu0 %v482
        %925 = vmatprep.subr.mxu0 %v485
        %926 = vmatpush1.msra.mxu0 %v484
        %927 = vmatprep.subr.mxu0 %v487
        %928 = vmatpush1.msra.mxu0 %v486
        %929 = vmatprep.subr.mxu0 %v489
        %930 = vmatpush1.msra.mxu0 %v488
        %931 = vmatprep.subr.mxu0 %v491
        %932 = vmatpush1.msra.mxu0 %v490
        %933 = vmatprep.subr.mxu0 %v493
        %934 = vmatpush1.msra.mxu0 %v492
        %935 = vmatprep.subr.mxu0 %v495
        %936 = vmatpush1.msra.mxu0 %v494
        %937 = vmatprep.subr.mxu0 %v497
        %938 = vmatpush1.msra.mxu0 %v496
        %939 = vmatprep.subr.mxu0 %v499
        %940 = vmatpush1.msra.mxu0 %v498
        %941 = vmatprep.subr.mxu0 %v501
        %942 = vmatpush1.msra.mxu0 %v500
        %943 = vmatprep.subr.mxu0 %v503
        %944 = vmatpush1.msra.mxu0 %v502
        %945 = vmatprep.subr.mxu0 %v505
        %946 = vmatpush1.msra.mxu0 %v504
        %947 = vmatprep.subr.mxu0 %v507
        %948 = vmatpush1.msra.mxu0 %v506
        %949 = vmatprep.subr.mxu0 %v509
        %950 = vmatpush1.msra.mxu0 %v508
        %951 = vmatprep.subr.mxu0 %v511
        %952 = vmatpush1.msra.mxu0 %v510
        %953 = vmatprep.subr.mxu0 %v513
        %954 = vmatpush1.msra.mxu0 %v512
        %955 = vmatprep.subr.mxu0 %v515
        %956 = vmatpush1.msra.mxu0 %v514
        %957 = vmatprep.subr.mxu0 %v517
        %958 = vmatpush1.msra.mxu0 %v516
        %959 = vmatprep.subr.mxu0 %v519
        %960 = vmatpush1.msra.mxu0 %v518
        %961 = vmatprep.mubr.f32.mxu0 %v343
        %962 = vmatmul.mubr.f32.gmra.mrb[0].mxu0 %v342
        %v963 = vpop.f32.mrb[0].mxu0
        %v964 = vadd.f32 %v875, %v963
        %v965 = vpop.f32.mrb[0].mxu0
        %v966 = vadd.f32 %v877, %v965
        %967 = vmatprep.mubr.f32.mxu0 %v356
        %968 = vmatmul.mubr.f32.gmra.mrb[0].mxu0 %v355
        %v969 = vpop.f32.mrb[0].mxu0
        %v970 = vadd.f32 %v881, %v969
        %v971 = vpop.f32.mrb[0].mxu0
        %v972 = vadd.f32 %v883, %v971
        %973 = vmatprep.mubr.f32.mxu0 %v369
        %974 = vmatmul.mubr.f32.gmra.mrb[0].mxu0 %v368
        %v975 = vpop.f32.mrb[0].mxu0
        %v976 = vadd.f32 %v887, %v975
        %v977 = vpop.f32.mrb[0].mxu0
        %v978 = vadd.f32 %v889, %v977
        %979 = vmatprep.mubr.f32.mxu0 %v382
        %980 = vmatmul.mubr.f32.gmra.mrb[0].mxu0 %v381
        %v981 = vpop.f32.mrb[0].mxu0
        %v982 = vadd.f32 %v893, %v981
        %v983 = vpop.f32.mrb[0].mxu0
        %v984 = vadd.f32 %v895, %v983
        %985 = vdwg.mxu0
        %986 = vmatprep.subr.mxu0 %v521
        %987 = vmatpush1.msra.mxu0 %v520
        %988 = vmatprep.subr.mxu0 %v523
        %989 = vmatpush1.msra.mxu0 %v522
        %990 = vmatprep.subr.mxu0 %v525
        %991 = vmatpush1.msra.mxu0 %v524
        %992 = vmatprep.subr.mxu0 %v527
        %993 = vmatpush1.msra.mxu0 %v526
        %994 = vmatprep.subr.mxu0 %v529
        %995 = vmatpush1.msra.mxu0 %v528
        %996 = vmatprep.subr.mxu0 %v531
        %997 = vmatpush1.msra.mxu0 %v530
        %998 = vmatprep.subr.mxu0 %v533
        %999 = vmatpush1.msra.mxu0 %v532
        %1000 = vmatprep.subr.mxu0 %v535
        %1001 = vmatpush1.msra.mxu0 %v534
        %1002 = vmatprep.subr.mxu0 %v537
        %1003 = vmatpush1.msra.mxu0 %v536
        %1004 = vmatprep.subr.mxu0 %v539
        %1005 = vmatpush1.msra.mxu0 %v538
        %1006 = vmatprep.subr.mxu0 %v541
        %1007 = vmatpush1.msra.mxu0 %v540
        %1008 = vmatprep.subr.mxu0 %v543
        %1009 = vmatpush1.msra.mxu0 %v542
        %1010 = vmatprep.subr.mxu0 %v545
        %1011 = vmatpush1.msra.mxu0 %v544
        %1012 = vmatprep.subr.mxu0 %v547
        %1013 = vmatpush1.msra.mxu0 %v546
        %1014 = vmatprep.subr.mxu0 %v549
        %1015 = vmatpush1.msra.mxu0 %v548
        %1016 = vmatprep.subr.mxu0 %v551
        %1017 = vmatpush1.msra.mxu0 %v550
        %1018 = vmatprep.subr.mxu0 %v553
        %1019 = vmatpush1.msra.mxu0 %v552
        %1020 = vmatprep.subr.mxu0 %v555
        %1021 = vmatpush1.msra.mxu0 %v554
        %1022 = vmatprep.subr.mxu0 %v557
        %1023 = vmatpush1.msra.mxu0 %v556
        %1024 = vmatprep.subr.mxu0 %v559
        %1025 = vmatpush1.msra.mxu0 %v558
        %1026 = vmatprep.subr.mxu0 %v561
        %1027 = vmatpush1.msra.mxu0 %v560
        %1028 = vmatprep.subr.mxu0 %v563
        %1029 = vmatpush1.msra.mxu0 %v562
        %1030 = vmatprep.subr.mxu0 %v565
        %1031 = vmatpush1.msra.mxu0 %v564
        %1032 = vmatprep.subr.mxu0 %v567
        %1033 = vmatpush1.msra.mxu0 %v566
        %1034 = vmatprep.subr.mxu0 %v569
        %1035 = vmatpush1.msra.mxu0 %v568
        %1036 = vmatprep.subr.mxu0 %v571
        %1037 = vmatpush1.msra.mxu0 %v570
        %1038 = vmatprep.subr.mxu0 %v573
        %1039 = vmatpush1.msra.mxu0 %v572
        %1040 = vmatprep.subr.mxu0 %v575
        %1041 = vmatpush1.msra.mxu0 %v574
        %1042 = vmatprep.subr.mxu0 %v577
        %1043 = vmatpush1.msra.mxu0 %v576
        %1044 = vmatprep.subr.mxu0 %v579
        %1045 = vmatpush1.msra.mxu0 %v578
        %1046 = vmatprep.subr.mxu0 %v581
        %1047 = vmatpush1.msra.mxu0 %v580
        %1048 = vmatprep.subr.mxu0 %v583
        %1049 = vmatpush1.msra.mxu0 %v582
        %1050 = vmatprep.mubr.f32.mxu0 %v345
        %1051 = vmatmul.mubr.f32.gmra.mrb[0].mxu0 %v344
        %v1052 = vpop.f32.mrb[0].mxu0
        %v1053 = vadd.f32 %v964, %v1052
        %v1054 = vpop.f32.mrb[0].mxu0
        %v1055 = vadd.f32 %v966, %v1054
        %1056 = vmatprep.mubr.f32.mxu0 %v358
        %1057 = vmatmul.mubr.f32.gmra.mrb[0].mxu0 %v357
        %v1058 = vpop.f32.mrb[0].mxu0
        %v1059 = vadd.f32 %v970, %v1058
        %v1060 = vpop.f32.mrb[0].mxu0
        %v1061 = vadd.f32 %v972, %v1060
        %1062 = vmatprep.mubr.f32.mxu0 %v371
        %1063 = vmatmul.mubr.f32.gmra.mrb[0].mxu0 %v370
        %v1064 = vpop.f32.mrb[0].mxu0
        %v1065 = vadd.f32 %v976, %v1064
        %v1066 = vpop.f32.mrb[0].mxu0
        %v1067 = vadd.f32 %v978, %v1066
        %1068 = vmatprep.mubr.f32.mxu0 %v384
        %1069 = vmatmul.mubr.f32.gmra.mrb[0].mxu0 %v383
        %v1070 = vpop.f32.mrb[0].mxu0
        %v1071 = vadd.f32 %v982, %v1070
        %v1072 = vpop.f32.mrb[0].mxu0
        %v1073 = vadd.f32 %v984, %v1072
        %1074 = vdwg.mxu0
        %1075 = vmatprep.subr.mxu0 %v585
        %1076 = vmatpush1.msra.mxu0 %v584
        %1077 = vmatprep.subr.mxu0 %v587
        %1078 = vmatpush1.msra.mxu0 %v586
        %1079 = vmatprep.subr.mxu0 %v589
        %1080 = vmatpush1.msra.mxu0 %v588
        %1081 = vmatprep.subr.mxu0 %v591
        %1082 = vmatpush1.msra.mxu0 %v590
        %1083 = vmatprep.subr.mxu0 %v593
        %1084 = vmatpush1.msra.mxu0 %v592
        %1085 = vmatprep.subr.mxu0 %v595
        %1086 = vmatpush1.msra.mxu0 %v594
        %1087 = vmatprep.subr.mxu0 %v597
        %1088 = vmatpush1.msra.mxu0 %v596
        %1089 = vmatprep.subr.mxu0 %v599
        %1090 = vmatpush1.msra.mxu0 %v598
        %1091 = vmatprep.subr.mxu0 %v601
        %1092 = vmatpush1.msra.mxu0 %v600
        %1093 = vmatprep.subr.mxu0 %v603
        %1094 = vmatpush1.msra.mxu0 %v602
        %1095 = vmatprep.subr.mxu0 %v605
        %1096 = vmatpush1.msra.mxu0 %v604
        %1097 = vmatprep.subr.mxu0 %v607
        %1098 = vmatpush1.msra.mxu0 %v606
        %1099 = vmatprep.subr.mxu0 %v609
        %1100 = vmatpush1.msra.mxu0 %v608
        %1101 = vmatprep.subr.mxu0 %v611
        %1102 = vmatpush1.msra.mxu0 %v610
        %1103 = vmatprep.subr.mxu0 %v613
        %1104 = vmatpush1.msra.mxu0 %v612
        %1105 = vmatprep.subr.mxu0 %v615
        %1106 = vmatpush1.msra.mxu0 %v614
        %1107 = vmatprep.subr.mxu0 %v617
        %1108 = vmatpush1.msra.mxu0 %v616
        %1109 = vmatprep.subr.mxu0 %v619
        %1110 = vmatpush1.msra.mxu0 %v618
        %1111 = vmatprep.subr.mxu0 %v621
        %1112 = vmatpush1.msra.mxu0 %v620
        %1113 = vmatprep.subr.mxu0 %v623
        %1114 = vmatpush1.msra.mxu0 %v622
        %1115 = vmatprep.subr.mxu0 %v625
        %1116 = vmatpush1.msra.mxu0 %v624
        %1117 = vmatprep.subr.mxu0 %v627
        %1118 = vmatpush1.msra.mxu0 %v626
        %1119 = vmatprep.subr.mxu0 %v629
        %1120 = vmatpush1.msra.mxu0 %v628
        %1121 = vmatprep.subr.mxu0 %v631
        %1122 = vmatpush1.msra.mxu0 %v630
        %1123 = vmatprep.subr.mxu0 %v633
        %1124 = vmatpush1.msra.mxu0 %v632
        %1125 = vmatprep.subr.mxu0 %v635
        %1126 = vmatpush1.msra.mxu0 %v634
        %1127 = vmatprep.subr.mxu0 %v637
        %1128 = vmatpush1.msra.mxu0 %v636
        %1129 = vmatprep.subr.mxu0 %v639
        %1130 = vmatpush1.msra.mxu0 %v638
        %1131 = vmatprep.subr.mxu0 %v641
        %1132 = vmatpush1.msra.mxu0 %v640
        %1133 = vmatprep.subr.mxu0 %v643
        %1134 = vmatpush1.msra.mxu0 %v642
        %1135 = vmatprep.subr.mxu0 %v645
        %1136 = vmatpush1.msra.mxu0 %v644
        %1137 = vmatprep.subr.mxu0 %v647
        %1138 = vmatpush1.msra.mxu0 %v646
        %1139 = vmatprep.mubr.f32.mxu0 %v347
        %1140 = vmatmul.mubr.f32.gmra.mrb[0].mxu0 %v346
        %v1141 = vpop.f32.mrb[0].mxu0
        %v1142 = vadd.f32 %v1053, %v1141
        %v1143 = vpop.f32.mrb[0].mxu0
        %v1144 = vadd.f32 %v1055, %v1143
        %1145 = vmatprep.mubr.f32.mxu0 %v360
        %1146 = vmatmul.mubr.f32.gmra.mrb[0].mxu0 %v359
        %v1147 = vpop.f32.mrb[0].mxu0
        %v1148 = vadd.f32 %v1059, %v1147
        %v1149 = vpop.f32.mrb[0].mxu0
        %v1150 = vadd.f32 %v1061, %v1149
        %1151 = vmatprep.mubr.f32.mxu0 %v373
        %1152 = vmatmul.mubr.f32.gmra.mrb[0].mxu0 %v372
        %v1153 = vpop.f32.mrb[0].mxu0
        %v1154 = vadd.f32 %v1065, %v1153
        %v1155 = vpop.f32.mrb[0].mxu0
        %v1156 = vadd.f32 %v1067, %v1155
        %1157 = vmatprep.mubr.f32.mxu0 %v386
        %1158 = vmatmul.mubr.f32.gmra.mrb[0].mxu0 %v385
        %v1159 = vpop.f32.mrb[0].mxu0
        %v1160 = vadd.f32 %v1071, %v1159
        %v1161 = vpop.f32.mrb[0].mxu0
        %v1162 = vadd.f32 %v1073, %v1161
        %1163 = vdwg.mxu0
        %1164 = vmatprep.subr.mxu0 %v649
        %1165 = vmatpush1.msra.mxu0 %v648
        %1166 = vmatprep.subr.mxu0 %v651
        %1167 = vmatpush1.msra.mxu0 %v650
        %1168 = vmatprep.subr.mxu0 %v653
        %1169 = vmatpush1.msra.mxu0 %v652
        %1170 = vmatprep.subr.mxu0 %v655
        %1171 = vmatpush1.msra.mxu0 %v654
        %1172 = vmatprep.subr.mxu0 %v657
        %1173 = vmatpush1.msra.mxu0 %v656
        %1174 = vmatprep.subr.mxu0 %v659
        %1175 = vmatpush1.msra.mxu0 %v658
        %1176 = vmatprep.subr.mxu0 %v661
        %1177 = vmatpush1.msra.mxu0 %v660
        %1178 = vmatprep.subr.mxu0 %v663
        %1179 = vmatpush1.msra.mxu0 %v662
        %1180 = vmatprep.subr.mxu0 %v665
        %1181 = vmatpush1.msra.mxu0 %v664
        %1182 = vmatprep.subr.mxu0 %v667
        %1183 = vmatpush1.msra.mxu0 %v666
        %1184 = vmatprep.subr.mxu0 %v669
        %1185 = vmatpush1.msra.mxu0 %v668
        %1186 = vmatprep.subr.mxu0 %v671
        %1187 = vmatpush1.msra.mxu0 %v670
        %1188 = vmatprep.subr.mxu0 %v673
        %1189 = vmatpush1.msra.mxu0 %v672
        %1190 = vmatprep.subr.mxu0 %v675
        %1191 = vmatpush1.msra.mxu0 %v674
        %1192 = vmatprep.subr.mxu0 %v677
        %1193 = vmatpush1.msra.mxu0 %v676
        %1194 = vmatprep.subr.mxu0 %v679
        %1195 = vmatpush1.msra.mxu0 %v678
        %1196 = vmatprep.subr.mxu0 %v681
        %1197 = vmatpush1.msra.mxu0 %v680
        %1198 = vmatprep.subr.mxu0 %v683
        %1199 = vmatpush1.msra.mxu0 %v682
        %1200 = vmatprep.subr.mxu0 %v685
        %1201 = vmatpush1.msra.mxu0 %v684
        %1202 = vmatprep.subr.mxu0 %v687
        %1203 = vmatpush1.msra.mxu0 %v686
        %1204 = vmatprep.subr.mxu0 %v689
        %1205 = vmatpush1.msra.mxu0 %v688
        %1206 = vmatprep.subr.mxu0 %v691
        %1207 = vmatpush1.msra.mxu0 %v690
        %1208 = vmatprep.subr.mxu0 %v693
        %1209 = vmatpush1.msra.mxu0 %v692
        %1210 = vmatprep.subr.mxu0 %v695
        %1211 = vmatpush1.msra.mxu0 %v694
        %1212 = vmatprep.subr.mxu0 %v697
        %1213 = vmatpush1.msra.mxu0 %v696
        %1214 = vmatprep.subr.mxu0 %v699
        %1215 = vmatpush1.msra.mxu0 %v698
        %1216 = vmatprep.subr.mxu0 %v701
        %1217 = vmatpush1.msra.mxu0 %v700
        %1218 = vmatprep.subr.mxu0 %v703
        %1219 = vmatpush1.msra.mxu0 %v702
        %1220 = vmatprep.subr.mxu0 %v705
        %1221 = vmatpush1.msra.mxu0 %v704
        %1222 = vmatprep.subr.mxu0 %v707
        %1223 = vmatpush1.msra.mxu0 %v706
        %1224 = vmatprep.subr.mxu0 %v709
        %1225 = vmatpush1.msra.mxu0 %v708
        %1226 = vmatprep.subr.mxu0 %v711
        %1227 = vmatpush1.msra.mxu0 %v710
        %1228 = vmatprep.mubr.f32.mxu0 %v349
        %1229 = vmatmul.mubr.f32.gmra.mrb[0].mxu0 %v348
        %v1230 = vpop.f32.mrb[0].mxu0
        %v1231 = vadd.f32 %v1142, %v1230
        %v1232 = vpop.f32.mrb[0].mxu0
        %v1233 = vadd.f32 %v1144, %v1232
        %1234 = vmatprep.mubr.f32.mxu0 %v362
        %1235 = vmatmul.mubr.f32.gmra.mrb[0].mxu0 %v361
        %v1236 = vpop.f32.mrb[0].mxu0
        %v1237 = vadd.f32 %v1148, %v1236
        %v1238 = vpop.f32.mrb[0].mxu0
        %v1239 = vadd.f32 %v1150, %v1238
        %1240 = vmatprep.mubr.f32.mxu0 %v375
        %1241 = vmatmul.mubr.f32.gmra.mrb[0].mxu0 %v374
        %v1242 = vpop.f32.mrb[0].mxu0
        %v1243 = vadd.f32 %v1154, %v1242
        %v1244 = vpop.f32.mrb[0].mxu0
        %v1245 = vadd.f32 %v1156, %v1244
        %1246 = vmatprep.mubr.f32.mxu0 %v388
        %1247 = vmatmul.mubr.f32.gmra.mrb[0].mxu0 %v387
        %v1248 = vpop.f32.mrb[0].mxu0
        %v1249 = vadd.f32 %v1160, %v1248
        %v1250 = vpop.f32.mrb[0].mxu0
        %v1251 = vadd.f32 %v1162, %v1250
        %1252 = vdwg.mxu0
        %1253 = vmatprep.subr.mxu0 %v713
        %1254 = vmatpush1.msra.mxu0 %v712
        %1255 = vmatprep.subr.mxu0 %v715
        %1256 = vmatpush1.msra.mxu0 %v714
        %1257 = vmatprep.subr.mxu0 %v717
        %1258 = vmatpush1.msra.mxu0 %v716
        %1259 = vmatprep.subr.mxu0 %v719
        %1260 = vmatpush1.msra.mxu0 %v718
        %1261 = vmatprep.subr.mxu0 %v721
        %1262 = vmatpush1.msra.mxu0 %v720
        %1263 = vmatprep.subr.mxu0 %v723
        %1264 = vmatpush1.msra.mxu0 %v722
        %1265 = vmatprep.subr.mxu0 %v725
        %1266 = vmatpush1.msra.mxu0 %v724
        %1267 = vmatprep.subr.mxu0 %v727
        %1268 = vmatpush1.msra.mxu0 %v726
        %1269 = vmatprep.subr.mxu0 %v729
        %1270 = vmatpush1.msra.mxu0 %v728
        %1271 = vmatprep.subr.mxu0 %v731
        %1272 = vmatpush1.msra.mxu0 %v730
        %1273 = vmatprep.subr.mxu0 %v733
        %1274 = vmatpush1.msra.mxu0 %v732
        %1275 = vmatprep.subr.mxu0 %v735
        %1276 = vmatpush1.msra.mxu0 %v734
        %1277 = vmatprep.subr.mxu0 %v737
        %1278 = vmatpush1.msra.mxu0 %v736
        %1279 = vmatprep.subr.mxu0 %v739
        %1280 = vmatpush1.msra.mxu0 %v738
        %1281 = vmatprep.subr.mxu0 %v741
        %1282 = vmatpush1.msra.mxu0 %v740
        %1283 = vmatprep.subr.mxu0 %v743
        %1284 = vmatpush1.msra.mxu0 %v742
        %1285 = vmatprep.subr.mxu0 %v745
        %1286 = vmatpush1.msra.mxu0 %v744
        %1287 = vmatprep.subr.mxu0 %v747
        %1288 = vmatpush1.msra.mxu0 %v746
        %1289 = vmatprep.subr.mxu0 %v749
        %1290 = vmatpush1.msra.mxu0 %v748
        %1291 = vmatprep.subr.mxu0 %v751
        %1292 = vmatpush1.msra.mxu0 %v750
        %1293 = vmatprep.subr.mxu0 %v753
        %1294 = vmatpush1.msra.mxu0 %v752
        %1295 = vmatprep.subr.mxu0 %v755
        %1296 = vmatpush1.msra.mxu0 %v754
        %1297 = vmatprep.subr.mxu0 %v757
        %1298 = vmatpush1.msra.mxu0 %v756
        %1299 = vmatprep.subr.mxu0 %v759
        %1300 = vmatpush1.msra.mxu0 %v758
        %1301 = vmatprep.subr.mxu0 %v761
        %1302 = vmatpush1.msra.mxu0 %v760
        %1303 = vmatprep.subr.mxu0 %v763
        %1304 = vmatpush1.msra.mxu0 %v762
        %1305 = vmatprep.subr.mxu0 %v765
        %1306 = vmatpush1.msra.mxu0 %v764
        %1307 = vmatprep.subr.mxu0 %v767
        %1308 = vmatpush1.msra.mxu0 %v766
        %1309 = vmatprep.subr.mxu0 %v769
        %1310 = vmatpush1.msra.mxu0 %v768
        %1311 = vmatprep.subr.mxu0 %v771
        %1312 = vmatpush1.msra.mxu0 %v770
        %1313 = vmatprep.subr.mxu0 %v773
        %1314 = vmatpush1.msra.mxu0 %v772
        %1315 = vmatprep.subr.mxu0 %v775
        %1316 = vmatpush1.msra.mxu0 %v774
        %1317 = vmatprep.mubr.f32.mxu0 %v351
        %1318 = vmatmul.mubr.f32.gmra.mrb[0].mxu0 %v350
        %v1319 = vpop.f32.mrb[0].mxu0
        %v1320 = vadd.f32 %v1231, %v1319
        %v1321 = vpop.f32.mrb[0].mxu0
        %v1322 = vadd.f32 %v1233, %v1321
        %1323 = vmatprep.mubr.f32.mxu0 %v364
        %1324 = vmatmul.mubr.f32.gmra.mrb[0].mxu0 %v363
        %v1325 = vpop.f32.mrb[0].mxu0
        %v1326 = vadd.f32 %v1237, %v1325
        %v1327 = vpop.f32.mrb[0].mxu0
        %v1328 = vadd.f32 %v1239, %v1327
        %1329 = vmatprep.mubr.f32.mxu0 %v377
        %1330 = vmatmul.mubr.f32.gmra.mrb[0].mxu0 %v376
        %v1331 = vpop.f32.mrb[0].mxu0
        %v1332 = vadd.f32 %v1243, %v1331
        %v1333 = vpop.f32.mrb[0].mxu0
        %v1334 = vadd.f32 %v1245, %v1333
        %1335 = vmatprep.mubr.f32.mxu0 %v390
        %1336 = vmatmul.mubr.f32.gmra.mrb[0].mxu0 %v389
        %v1337 = vpop.f32.mrb[0].mxu0
        %v1338 = vadd.f32 %v1249, %v1337
        %v1339 = vpop.f32.mrb[0].mxu0
        %v1340 = vadd.f32 %v1251, %v1339
        %1341 = vdwg.mxu0
        %1342 = vmatprep.subr.mxu0 %v777
        %1343 = vmatpush1.msra.mxu0 %v776
        %1344 = vmatprep.subr.mxu0 %v779
        %1345 = vmatpush1.msra.mxu0 %v778
        %1346 = vmatprep.subr.mxu0 %v781
        %1347 = vmatpush1.msra.mxu0 %v780
        %1348 = vmatprep.subr.mxu0 %v783
        %1349 = vmatpush1.msra.mxu0 %v782
        %1350 = vmatprep.subr.mxu0 %v785
        %1351 = vmatpush1.msra.mxu0 %v784
        %1352 = vmatprep.subr.mxu0 %v787
        %1353 = vmatpush1.msra.mxu0 %v786
        %1354 = vmatprep.subr.mxu0 %v789
        %1355 = vmatpush1.msra.mxu0 %v788
        %1356 = vmatprep.subr.mxu0 %v791
        %1357 = vmatpush1.msra.mxu0 %v790
        %1358 = vmatprep.subr.mxu0 %v793
        %1359 = vmatpush1.msra.mxu0 %v792
        %1360 = vmatprep.subr.mxu0 %v795
        %1361 = vmatpush1.msra.mxu0 %v794
        %1362 = vmatprep.subr.mxu0 %v797
        %1363 = vmatpush1.msra.mxu0 %v796
        %1364 = vmatprep.subr.mxu0 %v799
        %1365 = vmatpush1.msra.mxu0 %v798
        %1366 = vmatprep.subr.mxu0 %v801
        %1367 = vmatpush1.msra.mxu0 %v800
        %1368 = vmatprep.subr.mxu0 %v803
        %1369 = vmatpush1.msra.mxu0 %v802
        %1370 = vmatprep.subr.mxu0 %v805
        %1371 = vmatpush1.msra.mxu0 %v804
        %1372 = vmatprep.subr.mxu0 %v807
        %1373 = vmatpush1.msra.mxu0 %v806
        %1374 = vmatprep.subr.mxu0 0.0
        %1375 = vmatpush1.msra.mxu0 0.0
        %1376 = vmatprep.subr.mxu0 0.0
        %1377 = vmatpush1.msra.mxu0 0.0
        %1378 = vmatprep.subr.mxu0 0.0
        %1379 = vmatpush1.msra.mxu0 0.0
        %1380 = vmatprep.subr.mxu0 0.0
        %1381 = vmatpush1.msra.mxu0 0.0
        %1382 = vmatprep.subr.mxu0 0.0
        %1383 = vmatpush1.msra.mxu0 0.0
        %1384 = vmatprep.subr.mxu0 0.0
        %1385 = vmatpush1.msra.mxu0 0.0
        %1386 = vmatprep.subr.mxu0 0.0
        %1387 = vmatpush1.msra.mxu0 0.0
        %1388 = vmatprep.subr.mxu0 0.0
        %1389 = vmatpush1.msra.mxu0 0.0
        %1390 = vmatprep.subr.mxu0 0.0
        %1391 = vmatpush1.msra.mxu0 0.0
        %1392 = vmatprep.subr.mxu0 0.0
        %1393 = vmatpush1.msra.mxu0 0.0
        %1394 = vmatprep.subr.mxu0 0.0
        %1395 = vmatpush1.msra.mxu0 0.0
        %1396 = vmatprep.subr.mxu0 0.0
        %1397 = vmatpush1.msra.mxu0 0.0
        %1398 = vmatprep.subr.mxu0 0.0
        %1399 = vmatpush1.msra.mxu0 0.0
        %1400 = vmatprep.subr.mxu0 0.0
        %1401 = vmatpush1.msra.mxu0 0.0
        %1402 = vmatprep.subr.mxu0 0.0
        %1403 = vmatpush1.msra.mxu0 0.0
        %1404 = vmatprep.subr.mxu0 0.0
        %1405 = vmatpush1.msra.mxu0 0.0
        %1406 = vmatprep.mubr.f32.mxu0 0.0
        %1407 = vmatmul.mubr.f32.gmra.mrb[0].mxu0 %v352
        %v1408 = vpop.f32.mrb[0].mxu0
        %v1409 = vadd.f32 %v1320, %v1408
        %v1410 = vpop.f32.mrb[0].mxu0
        %v1411 = vadd.f32 %v1322, %v1410
        %1412 = vmatprep.mubr.f32.mxu0 0.0
        %1413 = vmatmul.mubr.f32.gmra.mrb[0].mxu0 %v365
        %v1414 = vpop.f32.mrb[0].mxu0
        %v1415 = vadd.f32 %v1326, %v1414
        %v1416 = vpop.f32.mrb[0].mxu0
        %v1417 = vadd.f32 %v1328, %v1416
        %1418 = vmatprep.mubr.f32.mxu0 0.0
        %1419 = vmatmul.mubr.f32.gmra.mrb[0].mxu0 %v378
        %v1420 = vpop.f32.mrb[0].mxu0
        %v1421 = vadd.f32 %v1332, %v1420
        %v1422 = vpop.f32.mrb[0].mxu0
        %v1423 = vadd.f32 %v1334, %v1422
        %1424 = vmatprep.mubr.f32.mxu0 0.0
        %1425 = vmatmul.mubr.f32.gmra.mrb[0].mxu0 %v391
        %v1426 = vpop.f32.mrb[0].mxu0
        %v1427 = vadd.f32 %v1338, %v1426
        %v1428 = vpop.f32.mrb[0].mxu0
        %v1429 = vadd.f32 %v1340, %v1428
        %1430 = vdwg.mxu0
        %v1431 = vfloor.f32 %v1409
        %v1432 = vfloor.f32 %v1411
        %v1433 = vfloor.f32 %v1415
        %v1434 = vfloor.f32 %v1417
        %v1435 = vfloor.f32 %v1421
        %v1436 = vfloor.f32 %v1423
        %v1437 = vfloor.f32 %v1427
        %v1438 = vfloor.f32 %v1429
        %v1439 = vmax.f32 %v1431, 0.0
        %v1440 = vmax.f32 %v1432, 0.0
        %v1441 = vmax.f32 %v1433, 0.0
        %v1442 = vmax.f32 %v1434, 0.0
        %v1443 = vmax.f32 %v1435, 0.0
        %v1444 = vmax.f32 %v1436, 0.0
        %v1445 = vmax.f32 %v1437, 0.0
        %v1446 = vmax.f32 %v1438, 0.0
        %v1447 = vmin.f32 %v1439, 255.0
        %v1448 = vmin.f32 %v1440, 255.0
        %v1449 = vmin.f32 %v1441, 255.0
        %v1450 = vmin.f32 %v1442, 255.0
        %v1451 = vmin.f32 %v1443, 255.0
        %v1452 = vmin.f32 %v1444, 255.0
        %v1453 = vmin.f32 %v1445, 255.0
        %v1454 = vmin.f32 %v1446, 255.0
        %s1455 = smul.u32 %s21, 32
        %v1456 = vlaneseq
        %v1457 = vshrl.u32 %v1456, 7
        %v1458 = vadd.s32 %v1457, 8
        %v1459 = vadd.s32 %v1457, 16
        %v1460 = vadd.s32 %v1457, 24
        %v1461 = vstv %s1455
        %v1462 = vadd.s32 %v1461, %v1457
        %v1463 = vadd.s32 %v1461, %v1458
        %v1464 = vadd.s32 %v1461, %v1459
        %v1465 = vadd.s32 %v1461, %v1460
        %vm1466 = vcmp.ge.s32.totalorder %v1462, 8
        %vm1467 = vcmp.ge.s32.totalorder %v1463, 8
        %vm1468 = vcmp.ge.s32.totalorder %v1464, 8
        %vm1469 = vcmp.ge.s32.totalorder %v1465, 8
        %v1470 = vsel %vm1466, 1, 0
        %v1471 = vsel %vm1467, 1, 0
        %v1472 = vsel %vm1468, 1, 0
        %v1473 = vsel %vm1469, 1, 0
        %v1474 = vcvt.s32.f32 %v1470
        %v1475 = vcvt.s32.f32 %v1471
        %v1476 = vcvt.s32.f32 %v1472
        %v1477 = vcvt.s32.f32 %v1473
        %vm1478 = vcmp.ge.s32.totalorder %v1462, 16
        %vm1479 = vcmp.ge.s32.totalorder %v1463, 16
        %vm1480 = vcmp.ge.s32.totalorder %v1464, 16
        %vm1481 = vcmp.ge.s32.totalorder %v1465, 16
        %v1482 = vsel %vm1478, 1, 0
        %v1483 = vsel %vm1479, 1, 0
        %v1484 = vsel %vm1480, 1, 0
        %v1485 = vsel %vm1481, 1, 0
        %v1486 = vcvt.s32.f32 %v1482
        %v1487 = vcvt.s32.f32 %v1483
        %v1488 = vcvt.s32.f32 %v1484
        %v1489 = vcvt.s32.f32 %v1485
        %v1490 = vmul.f32 %v1474, 0.0
        %v1491 = vmul.f32 %v1475, 0.0
        %v1492 = vmul.f32 %v1476, 0.0
        %v1493 = vmul.f32 %v1477, 0.0
        %v1494 = vadd.f32 %v1490, 0.007843138
        %v1495 = vadd.f32 %v1491, 0.007843138
        %v1496 = vadd.f32 %v1492, 0.007843138
        %v1497 = vadd.f32 %v1493, 0.007843138
        %v1498 = vmul.f32 %v1486, 0.0
        %v1499 = vmul.f32 %v1487, 0.0
        %v1500 = vmul.f32 %v1488, 0.0
        %v1501 = vmul.f32 %v1489, 0.0
        %v1502 = vadd.f32 %v1494, %v1498
        %v1503 = vadd.f32 %v1495, %v1499
        %v1504 = vadd.f32 %v1496, %v1500
        %v1505 = vadd.f32 %v1497, %v1501
        %v1506 = vadd.f32 %v1490, -1.0
        %v1507 = vadd.f32 %v1491, -1.0
        %v1508 = vadd.f32 %v1492, -1.0
        %v1509 = vadd.f32 %v1493, -1.0
        %v1510 = vadd.f32 %v1506, %v1498
        %v1511 = vadd.f32 %v1507, %v1499
        %v1512 = vadd.f32 %v1508, %v1500
        %v1513 = vadd.f32 %v1509, %v1501
        %v1514 = vmul.f32 %v1447, %v1502
        %v1515 = vmul.f32 %v1448, %v1502
        %v1516 = vmul.f32 %v1449, %v1503
        %v1517 = vmul.f32 %v1450, %v1503
        %v1518 = vmul.f32 %v1451, %v1504
        %v1519 = vmul.f32 %v1452, %v1504
        %v1520 = vmul.f32 %v1453, %v1505
        %v1521 = vmul.f32 %v1454, %v1505
        %v1522 = vadd.f32 %v1514, %v1510
        %v1523 = vadd.f32 %v1515, %v1510
        %v1524 = vadd.f32 %v1516, %v1511
        %v1525 = vadd.f32 %v1517, %v1511
        %v1526 = vadd.f32 %v1518, %v1512
        %v1527 = vadd.f32 %v1519, %v1512
        %v1528 = vadd.f32 %v1520, %v1513
        %v1529 = vadd.f32 %v1521, %v1513
        %1530 = vst [vmem:[%s221] sm:$0xff] %v1522
        %1531 = vst [vmem:[%s221 + $0x8] sm:$0xff] %v1523
        %1532 = vst [vmem:[%s221 + $0x10] sm:$0xff] %v1524
        %1533 = vst [vmem:[%s221 + $0x18] sm:$0xff] %v1525
        %1534 = vst [vmem:[%s221 + $0x20] sm:$0xff] %v1526
        %1535 = vst [vmem:[%s221 + $0x28] sm:$0xff] %v1527
        %1536 = vst [vmem:[%s221 + $0x30] sm:$0xff] %v1528
        %1537 = vst [vmem:[%s221 + $0x38] sm:$0xff] %v1529
        %s1538 = smul.u32 4, %s21
        %p1539 = scmp.lt.s32.totalorder %s20, 3
        %s1540 = scalar_select %p1539, %s20, 3
        %p1541 = scmp.lt.s32.totalorder %s1538, 3
        %s1542 = scalar_select %p1541, %s1538, 3
        %s1543 = smul.addr %s1542, 2
        %s1544 = smul.addr %s1540, 8
        %s1545 = sadd.s32 %s1543, %s1544
        %s1546 = smul.addr %s1545, 8
        %s1547 = scalar_lea.vmem %s2, %s1546
        // Predicated region
        $region33: #{camera_specific_transform_batch.1} parent=27 // pred_check
          %p1548 = pneg %p102
        $region34: #{camera_specific_transform_batch.1} parent=27 // pred_check_branch
          %1550 = sbr.rel (%p1548) target = $region36
        $region35: #{camera_specific_transform_batch.1} parent=27 // pred_region
          %s1551 = smul.u32 4, %s21
        $region36: #{camera_specific_transform_batch.1} parent=27 // pred_fallthru
          _
      $region28: #{camera_specific_transform_batch.1} parent=5 // pred_fallthru
        _
      %p1552 = scmp.le.s32.totalorder 2, %s11
      // Predicated region
      $region37: #{camera_specific_transform_batch.1} parent=5 // pred_check
        %p1553 = pneg %p1552
      $region38: #{camera_specific_transform_batch.1} parent=5 // pred_check_branch
        %1555 = sbr.rel (%p1553) target = $region40
      $region39: #{camera_specific_transform_batch.1} parent=5 // pred_region
        %s1556 = ssub.s32 %s11, 2
        // Predicated region
        $region41: #{camera_specific_transform_batch.1} parent=39 // pred_check
          %p1557 = pneg %p108
        $region42: #{camera_specific_transform_batch.1} parent=39 // pred_check_branch
          %1559 = sbr.rel (%p1557) target = $region44
        $region43: #{camera_specific_transform_batch.1} parent=39 // pred_region
          %s1560 = smul.u32 4, %s23
          %p1561 = scmp.lt.s32.totalorder %s22, 3
          %s1562 = scalar_select %p1561, %s22, 3
          %p1563 = scmp.lt.s32.totalorder %s1560, 3
          %s1564 = scalar_select %p1563, %s1560, 3
          %s1565 = smul.addr %s1564, 2
          %s1566 = smul.addr %s1562, 8
          %s1567 = sadd.s32 %s1565, %s1566
          %s1568 = smul.addr %s1567, 8
          %s1569 = scalar_lea.vmem %s2, %s1568
        $region44: #{camera_specific_transform_batch.1} parent=39 // pred_fallthru
          _
      $region40: #{camera_specific_transform_batch.1} parent=5 // pred_fallthru
        _
    $region6: #{camera_specific_transform_batch.1} parent=1 // loop_footer
      %s15 = sadd.s32 1, %s11
    $region7: #{camera_specific_transform_batch.1} parent=1 // loop_footer_branch
      %10 = sbr.rel target = $region3
    $region8: #{camera_specific_transform_batch.1} parent=1 // loop_exit
      _
    %1570 = vsyncpa [#allocation3], 1
    %s1571 = scalar_lea.sflag [#allocation3], 1
    %1572 = vsyncpa %s1571, 1

</llo_original>
